<compile_context>
chip_gen: v5e
topology: v5e:2x2
jax: 0.10.0
libtpu: 0.0.40
codegen_flags: <defaults>
</compile_context>

<pallas_src>
import numpy as np
import jax
import jax.numpy as jnp
from jax import lax
from jax.experimental import pallas as pl
from jax.experimental.pallas import tpu as pltpu


def _round_up(x, m):
    return (x + m - 1) // m * m


def _cdiv(a, b):
    return (a + b - 1) // b


# ---------------------------------------------------------------------------
# Fused HyperBasic kernel: one batch-block per grid step, channels on
# sublanes (padded to 8), images concatenated on lanes.
# ---------------------------------------------------------------------------
def _make_fused_kernel(dim, H, W, C0p, B_blk):
    L = H * W
    BL = B_blk * L

    def conv3x3_relu(v, w_ref, tap_masks):
        """3x3 'same' conv of v:(cin_pad, BL) with w_ref:(cout_pad, 9*cin_pad).

        im2col built from 9 lane-rolled, mask-killed copies of v (roll is an
        XLU op on lane-aligned tiles; the periodic masks zero every tap that
        falls outside its own HxW frame, including roll wraparound).
        """
        chunks = []
        for t in range(9):
            dh = t // 3 - 1
            dw = t % 3 - 1
            vm = v if t == 4 else v * tap_masks[t]          # (cin_pad, BL)
            s = dh * W + dw                                  # flat source offset
            if s != 0:
                # want patches[p] = v_masked[p + s]  ->  roll by -s (mod BL)
                vm = pltpu.roll(vm, shift=(-s) % BL, axis=1)
            chunks.append(vm)
        patches = jnp.concatenate(chunks, axis=0)            # (9*cin_pad, BL), 8-aligned
        y = jnp.dot(w_ref[...], patches, preferred_element_type=jnp.float32)
        return jnp.maximum(y, 0.0)

    def kernel(step_ref, x_ref, masks_ref, w1_ref, w2_ref, w3_ref, w4_ref, o_ref):
        x = x_ref[...].astype(jnp.float32)                   # (C0p, BL)
        step = step_ref[0]

        # Per-tap keep-masks, loaded once per step (constant VMEM block).
        tap_masks = [masks_ref[pl.ds(t, 1), :] for t in range(9)]   # each (1, BL)

        # input BasicBlock: dim -> 2*dim
        h = conv3x3_relu(x, w1_ref, tap_masks)                # (C1h, BL)
        feat = conv3x3_relu(h, w2_ref, tap_masks)             # (2*C0p, BL)

        # hyperbolic mixing; velo/theta are 8-aligned sublane slices
        velo = feat[:C0p]
        theta = feat[C0p:]
        s = step * velo
        tt = jnp.tanh(theta)
        e_sin = jnp.exp(s * jnp.sin(theta))
        e_cos = jnp.exp(-s * jnp.cos(theta))
        xp = x + tt
        xm = x - tt
        y1 = xp * e_sin - tt
        y2 = xp * e_cos - tt
        y3 = xm * e_sin + tt
        y4 = xm * e_cos + tt
        ys = jnp.concatenate([y1, y2, y3, y4], axis=0)        # (4*C0p, BL), 8-aligned

        # output BasicBlock: 4*dim -> dim, then residual
        g = conv3x3_relu(ys, w3_ref, tap_masks)               # (C0p, BL)
        out = conv3x3_relu(g, w4_ref, tap_masks)              # (C0p, BL)
        o_ref[...] = (x + out).astype(o_ref.dtype)

    return kernel


# ---------------------------------------------------------------------------
# Weight repacking: HWIO (3,3,cin,cout) -> (cout_pad, 9*cin_pad) with explicit
# input-row / output-row placement (so sublane layouts stay 8-aligned).
# ---------------------------------------------------------------------------
def _w2d_pad(w_hwio, in_rows, cin_pad, out_rows, cout_pad):
    w = np.asarray(w_hwio, dtype=np.float32)                  # (3,3,cin,cout)
    _, _, cin, cout = w.shape
    out = np.zeros((cout_pad, 9 * cin_pad), np.float32)
    in_rows = np.asarray(in_rows)
    out_rows = np.asarray(out_rows)
    for t in range(9):
        kh, kw = t // 3, t % 3
        blk = w[kh, kw]                                       # (cin, cout)
        out[np.ix_(out_rows, t * cin_pad + in_rows)] = blk.T  # (cout, cin)
    return jnp.asarray(out)


def _make_tap_masks(H, W, B_blk):
    """(9, B_blk*H*W) keep-masks (periodic in H*W) for the 9 rolled taps."""
    L = H * W
    p = np.arange(B_blk * L)
    col = p % W
    row = (p % L) // W
    ones = np.ones_like(p, np.float32)
    not_firstcol = (col != 0).astype(np.float32)
    not_lastcol = (col != W - 1).astype(np.float32)
    not_firstrow = (row != 0).astype(np.float32)
    not_lastrow = (row != H - 1).astype(np.float32)
    rowmask = {-1: not_lastrow, 0: ones, 1: not_firstrow}     # source-row mask
    colmask = {-1: not_lastcol, 0: ones, 1: not_firstcol}     # source-col mask
    masks = np.stack([rowmask[dh] * colmask[dw]
                      for dh in (-1, 0, 1) for dw in (-1, 0, 1)], axis=0)
    return jnp.asarray(masks)                                 # (9, B_blk*L)


# ---------------------------------------------------------------------------
# Wrapper
# ---------------------------------------------------------------------------
def hyper_basic_forward(x, params, dim, step):
    """x: NCHW (N, dim, H, W) float32 (same layout as the torch module)."""
    N, C, H, W = x.shape
    assert C == dim
    L = H * W

    # Channel paddings (sublane-aligned layouts).
    C0p = _round_up(dim, 8)            # x / g / out rows
    C1h = _round_up(2 * dim, 8)        # hidden h rows
    C1f = 2 * C0p                      # feat rows: velo in [0,C0p), theta in [C0p,2*C0p)
    C2p = 4 * C0p                      # ys rows: y_i at [i*C0p, i*C0p+dim)

    # Batch blocking: keep >=2 grid steps (v7x has 2 TensorCores), cap the
    # block so the per-step working set stays well under scoped VMEM.
    B_CAP = 16
    b_blk = min(B_CAP, _cdiv(N, 2)) if N >= 2 else 1
    n_grid = _cdiv(N, b_blk)
    N_pad = n_grid * b_blk
    BL = b_blk * L

    # Layout plumbing (cheap XLA copies on HBM): NCHW -> (C0p, N_pad*L) with
    # images adjacent on the lane axis and zero-padded channels / batch.
    x_cf = jnp.transpose(x.reshape(N, dim, L), (1, 0, 2))               # (dim, N, L)
    x_cf = jnp.pad(x_cf, ((0, C0p - dim), (0, N_pad - N), (0, 0)))
    x_cf = x_cf.reshape(C0p, N_pad * L)

    # Repacked / padded weights.
    rows_d = np.arange(dim)
    rows_h = np.arange(2 * dim)
    rows_feat = np.concatenate([np.arange(dim), C0p + np.arange(dim)])  # velo | theta
    rows_ys = np.concatenate([i * C0p + np.arange(dim) for i in range(4)])
    w1 = _w2d_pad(params["w_in1"], rows_d, C0p, rows_h, C1h)
    w2 = _w2d_pad(params["w_in2"], rows_h, C1h, rows_feat, C1f)
    w3 = _w2d_pad(params["w_out1"], rows_ys, C2p, rows_d, C0p)
    w4 = _w2d_pad(params["w_out2"], rows_d, C0p, rows_d, C0p)

    masks = _make_tap_masks(H, W, b_blk)                                 # (9, BL)
    step_arr = jnp.full((1,), step, jnp.float32)

    out_cf = pl.pallas_call(
        _make_fused_kernel(dim, H, W, C0p, b_blk),
        out_shape=jax.ShapeDtypeStruct((C0p, N_pad * L), x.dtype),
        grid=(n_grid,),
        in_specs=[
            pl.BlockSpec(memory_space=pltpu.MemorySpace.SMEM),   # step scalar
            pl.BlockSpec((C0p, BL), lambda n: (0, n)),           # x slab
            pl.BlockSpec((9, BL), lambda n: (0, 0)),             # tap masks (resident)
            pl.BlockSpec(w1.shape, lambda n: (0, 0)),            # weights (resident)
            pl.BlockSpec(w2.shape, lambda n: (0, 0)),
            pl.BlockSpec(w3.shape, lambda n: (0, 0)),
            pl.BlockSpec(w4.shape, lambda n: (0, 0)),
        ],
        out_specs=pl.BlockSpec((C0p, BL), lambda n: (0, n)),
        compiler_params=pltpu.CompilerParams(
            dimension_semantics=("parallel",),
            vmem_limit_bytes=32 * 1024 * 1024),
    )(step_arr, x_cf, masks, w1, w2, w3, w4)

    out = out_cf.reshape(C0p, N_pad, L)[:dim, :N]                        # drop padding
    return jnp.transpose(out, (1, 0, 2)).reshape(N, dim, H, W)


# ---------------------------------------------------------------------------
# Parameter init (HWIO conv weights) and pure-JAX reference.
# ---------------------------------------------------------------------------
def init_params(key, dim):
    k1, k2, k3, k4 = jax.random.split(key, 4)

    def w(k, cin, cout):
        return jax.random.normal(k, (3, 3, cin, cout), jnp.float32) / np.sqrt(9.0 * cin)

    return dict(
        w_in1=w(k1, dim, 2 * dim),      # input BasicBlock: dim -> 2*dim
        w_in2=w(k2, 2 * dim, 2 * dim),
        w_out1=w(k3, 4 * dim, dim),     # output BasicBlock: 4*dim -> dim
        w_out2=w(k4, dim, dim),
    )


def _conv_ref(x, w):
    return lax.conv_general_dilated(
        x, w, (1, 1), "SAME",
        dimension_numbers=("NCHW", "HWIO", "NCHW"),
        precision=lax.Precision.HIGHEST)


def hyper_basic_ref(x, params, dim, step):
    h = jax.nn.relu(_conv_ref(x, params["w_in1"]))
    feat = jax.nn.relu(_conv_ref(h, params["w_in2"]))
    velo, theta = feat[:, :dim], feat[:, dim:]
    s = step * velo
    tt = jnp.tanh(theta)
    y1 = (x + tt) * jnp.exp(s * jnp.sin(theta)) - tt
    y2 = (x + tt) * jnp.exp(-s * jnp.cos(theta)) - tt
    y3 = (x - tt) * jnp.exp(s * jnp.sin(theta)) + tt
    y4 = (x - tt) * jnp.exp(-s * jnp.cos(theta)) + tt
    ys = jnp.concatenate([y1, y2, y3, y4], axis=1)
    g = jax.nn.relu(_conv_ref(ys, params["w_out1"]))
    return x + jax.nn.relu(_conv_ref(g, params["w_out2"]))


if __name__ == "__main__":
    dim, N, H, W = 4, 2, 16, 16
    step = 0.5

    key = jax.random.PRNGKey(0)
    kx, kp = jax.random.split(key)
    # torch NCHW input layout.
    x = jax.random.normal(kx, (N, dim, H, W), jnp.float32)
    params = init_params(kp, dim)

    out = hyper_basic_forward(x, params, dim, step)
    out = jax.block_until_ready(out)

    ref = hyper_basic_ref(x, params, dim, step)
    np.testing.assert_allclose(np.asarray(out), np.asarray(ref), rtol=2e-3, atol=2e-3)

    print("KERNEL_OK")
</pallas_src>

<mosaic_0001>
module attributes {stable_mosaic.version = 11 : i64} {
  func.func @kernel(%arg0: i32, %arg1: memref<1xf32, #tpu.memory_space<smem>>, %arg2: memref<8x256xf32, #tpu.memory_space<vmem>>, %arg3: memref<9x256xf32, #tpu.memory_space<vmem>>, %arg4: memref<8x72xf32, #tpu.memory_space<vmem>>, %arg5: memref<16x72xf32, #tpu.memory_space<vmem>>, %arg6: memref<8x288xf32, #tpu.memory_space<vmem>>, %arg7: memref<8x72xf32, #tpu.memory_space<vmem>>, %arg8: memref<8x256xf32, #tpu.memory_space<vmem>>) attributes {dimension_semantics = [#tpu.dimension_semantics<parallel>], iteration_bounds = array<i64: 2>, scalar_prefetch = 0 : i64, scratch_operands = 0 : i64, tpu.core_type = #tpu.core_type<tc>, window_params = [{transform_indices = @transform_0, window_bounds = array<i64: 1>}, {transform_indices = @transform_1, window_bounds = array<i64: 8, 256>}, {pipeline_mode = #tpu.pipeline_mode<synchronous>, transform_indices = @transform_2, window_bounds = array<i64: 9, 256>}, {pipeline_mode = #tpu.pipeline_mode<synchronous>, transform_indices = @transform_3, window_bounds = array<i64: 8, 72>}, {pipeline_mode = #tpu.pipeline_mode<synchronous>, transform_indices = @transform_4, window_bounds = array<i64: 16, 72>}, {pipeline_mode = #tpu.pipeline_mode<synchronous>, transform_indices = @transform_5, window_bounds = array<i64: 8, 288>}, {pipeline_mode = #tpu.pipeline_mode<synchronous>, transform_indices = @transform_6, window_bounds = array<i64: 8, 72>}, {transform_indices = @transform_7, window_bounds = array<i64: 8, 256>}]} {
    %c0 = arith.constant 0 : index
    %c0_0 = arith.constant 0 : index
    %0 = vector.load %arg2[%c0, %c0_0] : memref<8x256xf32, #tpu.memory_space<vmem>>, vector<8x256xf32>
    %c0_1 = arith.constant 0 : index
    %1 = memref.load %arg1[%c0_1] : memref<1xf32, #tpu.memory_space<smem>>
    %c0_2 = arith.constant 0 : index
    %c0_3 = arith.constant 0 : index
    %2 = vector.load %arg3[%c0_2, %c0_3] : memref<9x256xf32, #tpu.memory_space<vmem>>, vector<1x256xf32>
    %c1 = arith.constant 1 : index
    %c0_4 = arith.constant 0 : index
    %3 = vector.load %arg3[%c1, %c0_4] : memref<9x256xf32, #tpu.memory_space<vmem>>, vector<1x256xf32>
    %c2 = arith.constant 2 : index
    %c0_5 = arith.constant 0 : index
    %4 = vector.load %arg3[%c2, %c0_5] : memref<9x256xf32, #tpu.memory_space<vmem>>, vector<1x256xf32>
    %c3 = arith.constant 3 : index
    %c0_6 = arith.constant 0 : index
    %5 = vector.load %arg3[%c3, %c0_6] : memref<9x256xf32, #tpu.memory_space<vmem>>, vector<1x256xf32>
    %c5 = arith.constant 5 : index
    %c0_7 = arith.constant 0 : index
    %6 = vector.load %arg3[%c5, %c0_7] : memref<9x256xf32, #tpu.memory_space<vmem>>, vector<1x256xf32>
    %c6 = arith.constant 6 : index
    %c0_8 = arith.constant 0 : index
    %7 = vector.load %arg3[%c6, %c0_8] : memref<9x256xf32, #tpu.memory_space<vmem>>, vector<1x256xf32>
    %c7 = arith.constant 7 : index
    %c0_9 = arith.constant 0 : index
    %8 = vector.load %arg3[%c7, %c0_9] : memref<9x256xf32, #tpu.memory_space<vmem>>, vector<1x256xf32>
    %c8 = arith.constant 8 : index
    %c0_10 = arith.constant 0 : index
    %9 = vector.load %arg3[%c8, %c0_10] : memref<9x256xf32, #tpu.memory_space<vmem>>, vector<1x256xf32>
    %10 = vector.broadcast %2 : vector<1x256xf32> to vector<8x256xf32>
    %11 = arith.mulf %0, %10 : vector<8x256xf32>
    %c17_i32 = arith.constant 17 : i32
    %12 = tpu.dynamic_rotate %11 by %c17_i32 dim 1 : vector<8x256xf32>, i32 -> vector<8x256xf32>
    %13 = vector.broadcast %3 : vector<1x256xf32> to vector<8x256xf32>
    %14 = arith.mulf %0, %13 : vector<8x256xf32>
    %c16_i32 = arith.constant 16 : i32
    %15 = tpu.dynamic_rotate %14 by %c16_i32 dim 1 : vector<8x256xf32>, i32 -> vector<8x256xf32>
    %16 = vector.broadcast %4 : vector<1x256xf32> to vector<8x256xf32>
    %17 = arith.mulf %0, %16 : vector<8x256xf32>
    %c15_i32 = arith.constant 15 : i32
    %18 = tpu.dynamic_rotate %17 by %c15_i32 dim 1 : vector<8x256xf32>, i32 -> vector<8x256xf32>
    %19 = vector.broadcast %5 : vector<1x256xf32> to vector<8x256xf32>
    %20 = arith.mulf %0, %19 : vector<8x256xf32>
    %c1_i32 = arith.constant 1 : i32
    %21 = tpu.dynamic_rotate %20 by %c1_i32 dim 1 : vector<8x256xf32>, i32 -> vector<8x256xf32>
    %22 = vector.broadcast %6 : vector<1x256xf32> to vector<8x256xf32>
    %23 = arith.mulf %0, %22 : vector<8x256xf32>
    %c255_i32 = arith.constant 255 : i32
    %24 = tpu.dynamic_rotate %23 by %c255_i32 dim 1 : vector<8x256xf32>, i32 -> vector<8x256xf32>
    %25 = vector.broadcast %7 : vector<1x256xf32> to vector<8x256xf32>
    %26 = arith.mulf %0, %25 : vector<8x256xf32>
    %c241_i32 = arith.constant 241 : i32
    %27 = tpu.dynamic_rotate %26 by %c241_i32 dim 1 : vector<8x256xf32>, i32 -> vector<8x256xf32>
    %28 = vector.broadcast %8 : vector<1x256xf32> to vector<8x256xf32>
    %29 = arith.mulf %0, %28 : vector<8x256xf32>
    %c240_i32 = arith.constant 240 : i32
    %30 = tpu.dynamic_rotate %29 by %c240_i32 dim 1 : vector<8x256xf32>, i32 -> vector<8x256xf32>
    %31 = vector.broadcast %9 : vector<1x256xf32> to vector<8x256xf32>
    %32 = arith.mulf %0, %31 : vector<8x256xf32>
    %c239_i32 = arith.constant 239 : i32
    %33 = tpu.dynamic_rotate %32 by %c239_i32 dim 1 : vector<8x256xf32>, i32 -> vector<8x256xf32>
    %34 = tpu.concatenate %12, %15, %18, %21, %0, %24, %27, %30, %33 in 0 : vector<8x256xf32>, vector<8x256xf32>, vector<8x256xf32>, vector<8x256xf32>, vector<8x256xf32>, vector<8x256xf32>, vector<8x256xf32>, vector<8x256xf32>, vector<8x256xf32> -> vector<72x256xf32>
    %c0_11 = arith.constant 0 : index
    %c0_12 = arith.constant 0 : index
    %35 = vector.load %arg4[%c0_11, %c0_12] : memref<8x72xf32, #tpu.memory_space<vmem>>, vector<8x72xf32>
    %cst = arith.constant dense<0.000000e+00> : vector<8x256xf32>
    %36 = tpu.matmul %35, %34, %cst {dimension_numbers = #tpu.dot_dimension_numbers<[1], [0], [0], [1], [0, 0, 1, 1], [], []>} : vector<8x72xf32>, vector<72x256xf32>, vector<8x256xf32> -> vector<8x256xf32>
    %cst_13 = arith.constant 0.000000e+00 : f32
    %37 = vector.broadcast %cst_13 : f32 to vector<8x256xf32>
    %38 = arith.maximumf %36, %37 : vector<8x256xf32>
    %39 = vector.broadcast %2 : vector<1x256xf32> to vector<8x256xf32>
    %40 = arith.mulf %38, %39 : vector<8x256xf32>
    %c17_i32_14 = arith.constant 17 : i32
    %41 = tpu.dynamic_rotate %40 by %c17_i32_14 dim 1 : vector<8x256xf32>, i32 -> vector<8x256xf32>
    %42 = vector.broadcast %3 : vector<1x256xf32> to vector<8x256xf32>
    %43 = arith.mulf %38, %42 : vector<8x256xf32>
    %c16_i32_15 = arith.constant 16 : i32
    %44 = tpu.dynamic_rotate %43 by %c16_i32_15 dim 1 : vector<8x256xf32>, i32 -> vector<8x256xf32>
    %45 = vector.broadcast %4 : vector<1x256xf32> to vector<8x256xf32>
    %46 = arith.mulf %38, %45 : vector<8x256xf32>
    %c15_i32_16 = arith.constant 15 : i32
    %47 = tpu.dynamic_rotate %46 by %c15_i32_16 dim 1 : vector<8x256xf32>, i32 -> vector<8x256xf32>
    %48 = vector.broadcast %5 : vector<1x256xf32> to vector<8x256xf32>
    %49 = arith.mulf %38, %48 : vector<8x256xf32>
    %c1_i32_17 = arith.constant 1 : i32
    %50 = tpu.dynamic_rotate %49 by %c1_i32_17 dim 1 : vector<8x256xf32>, i32 -> vector<8x256xf32>
    %51 = vector.broadcast %6 : vector<1x256xf32> to vector<8x256xf32>
    %52 = arith.mulf %38, %51 : vector<8x256xf32>
    %c255_i32_18 = arith.constant 255 : i32
    %53 = tpu.dynamic_rotate %52 by %c255_i32_18 dim 1 : vector<8x256xf32>, i32 -> vector<8x256xf32>
    %54 = vector.broadcast %7 : vector<1x256xf32> to vector<8x256xf32>
    %55 = arith.mulf %38, %54 : vector<8x256xf32>
    %c241_i32_19 = arith.constant 241 : i32
    %56 = tpu.dynamic_rotate %55 by %c241_i32_19 dim 1 : vector<8x256xf32>, i32 -> vector<8x256xf32>
    %57 = vector.broadcast %8 : vector<1x256xf32> to vector<8x256xf32>
    %58 = arith.mulf %38, %57 : vector<8x256xf32>
    %c240_i32_20 = arith.constant 240 : i32
    %59 = tpu.dynamic_rotate %58 by %c240_i32_20 dim 1 : vector<8x256xf32>, i32 -> vector<8x256xf32>
    %60 = vector.broadcast %9 : vector<1x256xf32> to vector<8x256xf32>
    %61 = arith.mulf %38, %60 : vector<8x256xf32>
    %c239_i32_21 = arith.constant 239 : i32
    %62 = tpu.dynamic_rotate %61 by %c239_i32_21 dim 1 : vector<8x256xf32>, i32 -> vector<8x256xf32>
    %63 = tpu.concatenate %41, %44, %47, %50, %38, %53, %56, %59, %62 in 0 : vector<8x256xf32>, vector<8x256xf32>, vector<8x256xf32>, vector<8x256xf32>, vector<8x256xf32>, vector<8x256xf32>, vector<8x256xf32>, vector<8x256xf32>, vector<8x256xf32> -> vector<72x256xf32>
    %c0_22 = arith.constant 0 : index
    %c0_23 = arith.constant 0 : index
    %64 = vector.load %arg5[%c0_22, %c0_23] : memref<16x72xf32, #tpu.memory_space<vmem>>, vector<16x72xf32>
    %cst_24 = arith.constant dense<0.000000e+00> : vector<16x256xf32>
    %65 = tpu.matmul %64, %63, %cst_24 {dimension_numbers = #tpu.dot_dimension_numbers<[1], [0], [0], [1], [0, 0, 1, 1], [], []>} : vector<16x72xf32>, vector<72x256xf32>, vector<16x256xf32> -> vector<16x256xf32>
    %cst_25 = arith.constant 0.000000e+00 : f32
    %66 = vector.broadcast %cst_25 : f32 to vector<16x256xf32>
    %67 = arith.maximumf %65, %66 : vector<16x256xf32>
    %68 = vector.extract_strided_slice %67 {offsets = [0, 0], sizes = [8, 256], strides = [1, 1]} : vector<16x256xf32> to vector<8x256xf32>
    %69 = vector.extract_strided_slice %67 {offsets = [8, 0], sizes = [8, 256], strides = [1, 1]} : vector<16x256xf32> to vector<8x256xf32>
    %70 = vector.broadcast %1 : f32 to vector<8x256xf32>
    %71 = arith.mulf %70, %68 : vector<8x256xf32>
    %72 = math.tanh %69 : vector<8x256xf32>
    %73 = math.sin %69 : vector<8x256xf32>
    %74 = arith.mulf %71, %73 : vector<8x256xf32>
    %75 = math.exp %74 : vector<8x256xf32>
    %cst_26 = arith.constant 0.000000e+00 : f32
    %76 = vector.broadcast %cst_26 : f32 to vector<8x256xf32>
    %77 = arith.subf %76, %71 : vector<8x256xf32>
    %78 = math.cos %69 : vector<8x256xf32>
    %79 = arith.mulf %77, %78 : vector<8x256xf32>
    %80 = math.exp %79 : vector<8x256xf32>
    %81 = arith.addf %0, %72 : vector<8x256xf32>
    %82 = arith.subf %0, %72 : vector<8x256xf32>
    %83 = arith.mulf %81, %75 : vector<8x256xf32>
    %84 = arith.subf %83, %72 : vector<8x256xf32>
    %85 = arith.mulf %81, %80 : vector<8x256xf32>
    %86 = arith.subf %85, %72 : vector<8x256xf32>
    %87 = arith.mulf %82, %75 : vector<8x256xf32>
    %88 = arith.addf %87, %72 : vector<8x256xf32>
    %89 = arith.mulf %82, %80 : vector<8x256xf32>
    %90 = arith.addf %89, %72 : vector<8x256xf32>
    %91 = tpu.concatenate %84, %86, %88, %90 in 0 : vector<8x256xf32>, vector<8x256xf32>, vector<8x256xf32>, vector<8x256xf32> -> vector<32x256xf32>
    %92 = vector.broadcast %2 : vector<1x256xf32> to vector<32x256xf32>
    %93 = arith.mulf %91, %92 : vector<32x256xf32>
    %c17_i32_27 = arith.constant 17 : i32
    %94 = tpu.dynamic_rotate %93 by %c17_i32_27 dim 1 : vector<32x256xf32>, i32 -> vector<32x256xf32>
    %95 = vector.broadcast %3 : vector<1x256xf32> to vector<32x256xf32>
    %96 = arith.mulf %91, %95 : vector<32x256xf32>
    %c16_i32_28 = arith.constant 16 : i32
    %97 = tpu.dynamic_rotate %96 by %c16_i32_28 dim 1 : vector<32x256xf32>, i32 -> vector<32x256xf32>
    %98 = vector.broadcast %4 : vector<1x256xf32> to vector<32x256xf32>
    %99 = arith.mulf %91, %98 : vector<32x256xf32>
    %c15_i32_29 = arith.constant 15 : i32
    %100 = tpu.dynamic_rotate %99 by %c15_i32_29 dim 1 : vector<32x256xf32>, i32 -> vector<32x256xf32>
    %101 = vector.broadcast %5 : vector<1x256xf32> to vector<32x256xf32>
    %102 = arith.mulf %91, %101 : vector<32x256xf32>
    %c1_i32_30 = arith.constant 1 : i32
    %103 = tpu.dynamic_rotate %102 by %c1_i32_30 dim 1 : vector<32x256xf32>, i32 -> vector<32x256xf32>
    %104 = vector.broadcast %6 : vector<1x256xf32> to vector<32x256xf32>
    %105 = arith.mulf %91, %104 : vector<32x256xf32>
    %c255_i32_31 = arith.constant 255 : i32
    %106 = tpu.dynamic_rotate %105 by %c255_i32_31 dim 1 : vector<32x256xf32>, i32 -> vector<32x256xf32>
    %107 = vector.broadcast %7 : vector<1x256xf32> to vector<32x256xf32>
    %108 = arith.mulf %91, %107 : vector<32x256xf32>
    %c241_i32_32 = arith.constant 241 : i32
    %109 = tpu.dynamic_rotate %108 by %c241_i32_32 dim 1 : vector<32x256xf32>, i32 -> vector<32x256xf32>
    %110 = vector.broadcast %8 : vector<1x256xf32> to vector<32x256xf32>
    %111 = arith.mulf %91, %110 : vector<32x256xf32>
    %c240_i32_33 = arith.constant 240 : i32
    %112 = tpu.dynamic_rotate %111 by %c240_i32_33 dim 1 : vector<32x256xf32>, i32 -> vector<32x256xf32>
    %113 = vector.broadcast %9 : vector<1x256xf32> to vector<32x256xf32>
    %114 = arith.mulf %91, %113 : vector<32x256xf32>
    %c239_i32_34 = arith.constant 239 : i32
    %115 = tpu.dynamic_rotate %114 by %c239_i32_34 dim 1 : vector<32x256xf32>, i32 -> vector<32x256xf32>
    %116 = tpu.concatenate %94, %97, %100, %103, %91, %106, %109, %112, %115 in 0 : vector<32x256xf32>, vector<32x256xf32>, vector<32x256xf32>, vector<32x256xf32>, vector<32x256xf32>, vector<32x256xf32>, vector<32x256xf32>, vector<32x256xf32>, vector<32x256xf32> -> vector<288x256xf32>
    %c0_35 = arith.constant 0 : index
    %c0_36 = arith.constant 0 : index
    %117 = vector.load %arg6[%c0_35, %c0_36] : memref<8x288xf32, #tpu.memory_space<vmem>>, vector<8x288xf32>
    %cst_37 = arith.constant dense<0.000000e+00> : vector<8x256xf32>
    %118 = tpu.matmul %117, %116, %cst_37 {dimension_numbers = #tpu.dot_dimension_numbers<[1], [0], [0], [1], [0, 0, 1, 1], [], []>} : vector<8x288xf32>, vector<288x256xf32>, vector<8x256xf32> -> vector<8x256xf32>
    %cst_38 = arith.constant 0.000000e+00 : f32
    %119 = vector.broadcast %cst_38 : f32 to vector<8x256xf32>
    %120 = arith.maximumf %118, %119 : vector<8x256xf32>
    %121 = vector.broadcast %2 : vector<1x256xf32> to vector<8x256xf32>
    %122 = arith.mulf %120, %121 : vector<8x256xf32>
    %c17_i32_39 = arith.constant 17 : i32
    %123 = tpu.dynamic_rotate %122 by %c17_i32_39 dim 1 : vector<8x256xf32>, i32 -> vector<8x256xf32>
    %124 = vector.broadcast %3 : vector<1x256xf32> to vector<8x256xf32>
    %125 = arith.mulf %120, %124 : vector<8x256xf32>
    %c16_i32_40 = arith.constant 16 : i32
    %126 = tpu.dynamic_rotate %125 by %c16_i32_40 dim 1 : vector<8x256xf32>, i32 -> vector<8x256xf32>
    %127 = vector.broadcast %4 : vector<1x256xf32> to vector<8x256xf32>
    %128 = arith.mulf %120, %127 : vector<8x256xf32>
    %c15_i32_41 = arith.constant 15 : i32
    %129 = tpu.dynamic_rotate %128 by %c15_i32_41 dim 1 : vector<8x256xf32>, i32 -> vector<8x256xf32>
    %130 = vector.broadcast %5 : vector<1x256xf32> to vector<8x256xf32>
    %131 = arith.mulf %120, %130 : vector<8x256xf32>
    %c1_i32_42 = arith.constant 1 : i32
    %132 = tpu.dynamic_rotate %131 by %c1_i32_42 dim 1 : vector<8x256xf32>, i32 -> vector<8x256xf32>
    %133 = vector.broadcast %6 : vector<1x256xf32> to vector<8x256xf32>
    %134 = arith.mulf %120, %133 : vector<8x256xf32>
    %c255_i32_43 = arith.constant 255 : i32
    %135 = tpu.dynamic_rotate %134 by %c255_i32_43 dim 1 : vector<8x256xf32>, i32 -> vector<8x256xf32>
    %136 = vector.broadcast %7 : vector<1x256xf32> to vector<8x256xf32>
    %137 = arith.mulf %120, %136 : vector<8x256xf32>
    %c241_i32_44 = arith.constant 241 : i32
    %138 = tpu.dynamic_rotate %137 by %c241_i32_44 dim 1 : vector<8x256xf32>, i32 -> vector<8x256xf32>
    %139 = vector.broadcast %8 : vector<1x256xf32> to vector<8x256xf32>
    %140 = arith.mulf %120, %139 : vector<8x256xf32>
    %c240_i32_45 = arith.constant 240 : i32
    %141 = tpu.dynamic_rotate %140 by %c240_i32_45 dim 1 : vector<8x256xf32>, i32 -> vector<8x256xf32>
    %142 = vector.broadcast %9 : vector<1x256xf32> to vector<8x256xf32>
    %143 = arith.mulf %120, %142 : vector<8x256xf32>
    %c239_i32_46 = arith.constant 239 : i32
    %144 = tpu.dynamic_rotate %143 by %c239_i32_46 dim 1 : vector<8x256xf32>, i32 -> vector<8x256xf32>
    %145 = tpu.concatenate %123, %126, %129, %132, %120, %135, %138, %141, %144 in 0 : vector<8x256xf32>, vector<8x256xf32>, vector<8x256xf32>, vector<8x256xf32>, vector<8x256xf32>, vector<8x256xf32>, vector<8x256xf32>, vector<8x256xf32>, vector<8x256xf32> -> vector<72x256xf32>
    %c0_47 = arith.constant 0 : index
    %c0_48 = arith.constant 0 : index
    %146 = vector.load %arg7[%c0_47, %c0_48] : memref<8x72xf32, #tpu.memory_space<vmem>>, vector<8x72xf32>
    %cst_49 = arith.constant dense<0.000000e+00> : vector<8x256xf32>
    %147 = tpu.matmul %146, %145, %cst_49 {dimension_numbers = #tpu.dot_dimension_numbers<[1], [0], [0], [1], [0, 0, 1, 1], [], []>} : vector<8x72xf32>, vector<72x256xf32>, vector<8x256xf32> -> vector<8x256xf32>
    %cst_50 = arith.constant 0.000000e+00 : f32
    %148 = vector.broadcast %cst_50 : f32 to vector<8x256xf32>
    %149 = arith.maximumf %147, %148 : vector<8x256xf32>
    %150 = arith.addf %0, %149 : vector<8x256xf32>
    %c0_51 = arith.constant 0 : index
    %c0_52 = arith.constant 0 : index
    %151 = vector.load %arg8[%c0_51, %c0_52] : memref<8x256xf32, #tpu.memory_space<vmem>>, vector<8x256xf32>
    tpu.vector_store %arg8[%c0_51, %c0_52], %150 {strides = array<i32>} : memref<8x256xf32, #tpu.memory_space<vmem>>, vector<8x256xf32>,
    return
  }
  func.func @transform_0(%arg0: i32) -> i32 {
    %c0_i32 = arith.constant 0 : i32
    %c0_i32_0 = arith.constant 0 : i32
    return %c0_i32 : i32
  }
  func.func @transform_1(%arg0: i32) -> (i32, i32) {
    %c0_i32 = arith.constant 0 : i32
    %c0_i32_0 = arith.constant 0 : i32
    return %c0_i32, %arg0 : i32, i32
  }
  func.func @transform_2(%arg0: i32) -> (i32, i32) {
    %c0_i32 = arith.constant 0 : i32
    %c0_i32_0 = arith.constant 0 : i32
    %c0_i32_1 = arith.constant 0 : i32
    return %c0_i32, %c0_i32_0 : i32, i32
  }
  func.func @transform_3(%arg0: i32) -> (i32, i32) {
    %c0_i32 = arith.constant 0 : i32
    %c0_i32_0 = arith.constant 0 : i32
    %c0_i32_1 = arith.constant 0 : i32
    return %c0_i32, %c0_i32_0 : i32, i32
  }
  func.func @transform_4(%arg0: i32) -> (i32, i32) {
    %c0_i32 = arith.constant 0 : i32
    %c0_i32_0 = arith.constant 0 : i32
    %c0_i32_1 = arith.constant 0 : i32
    return %c0_i32, %c0_i32_0 : i32, i32
  }
  func.func @transform_5(%arg0: i32) -> (i32, i32) {
    %c0_i32 = arith.constant 0 : i32
    %c0_i32_0 = arith.constant 0 : i32
    %c0_i32_1 = arith.constant 0 : i32
    return %c0_i32, %c0_i32_0 : i32, i32
  }
  func.func @transform_6(%arg0: i32) -> (i32, i32) {
    %c0_i32 = arith.constant 0 : i32
    %c0_i32_0 = arith.constant 0 : i32
    %c0_i32_1 = arith.constant 0 : i32
    return %c0_i32, %c0_i32_0 : i32, i32
  }
  func.func @transform_7(%arg0: i32) -> (i32, i32) {
    %c0_i32 = arith.constant 0 : i32
    %c0_i32_0 = arith.constant 0 : i32
    return %c0_i32, %arg0 : i32, i32
  }
}

</mosaic_0001>

<llo_original>
// kernel: tpu_custom_call.1
$region0: #{tpu_custom_call.1}
  #allocation0 [shape = 'u32[]', space=smem, size = 0x4, offset = 0x4, fixed_abs, tag = 'smem constant byte address 0x4 - core index']
  #allocation1 [shape = 'u32[72,128]{1,0:T(1,128)}', space=vmem, size = 0x9000, scoped, tag = 'internal scratch']
  #allocation2 [shape = 'f32[1]{0:T(128)S(6)}', space=smem, size = 0x200, scoped, tag = 'scoped memory for tpu_custom_call.1']
  %s0 = inlined_call_operand.<no memory space> [shape: f32[1], index: 0, kind: input, shape index: {}]
  %s1 = inlined_call_operand.hbm [shape: f32[8,512], index: 1, kind: input, shape index: {}]
  %s2 = inlined_call_operand.hbm [shape: f32[9,256], index: 2, kind: input, shape index: {}]
  %s3 = inlined_call_operand.hbm [shape: f32[8,72], index: 3, kind: input, shape index: {}]
  %s4 = inlined_call_operand.hbm [shape: f32[16,72], index: 4, kind: input, shape index: {}]
  %s5 = inlined_call_operand.hbm [shape: f32[8,288], index: 5, kind: input, shape index: {}]
  %s6 = inlined_call_operand.hbm [shape: f32[8,72], index: 6, kind: input, shape index: {}]
  %s7 = inlined_call_operand.hbm [shape: f32[8,512], index: 7, kind: output, shape index: {}]
  %s8 = sld [smem:[#allocation0]]
  $region85: #{tpu_custom_call.1} parent=0
    _
  %s10 = ssub.s32 1, %s8
  %s11 = scalar_select 0, %s10, %s8
  %12 = sst [smem:[#allocation2]] %s0
  $region1: #{tpu_custom_call.1} parent=0
    #allocation3 [shape = 'u8[16384]{0}', space=vmem, size = 0x4000, scoped, tag = 'input window, operand 1']
    #allocation4 [shape = 's32[2]{0}', space=sflag, size = 0x8, scoped, tag = 'scoped memory for tpu_custom_call.1']
    #allocation5 [shape = 's32[2]{0}', space=sflag, size = 0x8, scoped, tag = 'scoped memory for tpu_custom_call.1']
    #allocation6 [shape = 'u8[16384]{0}', space=vmem, size = 0x4000, scoped, tag = 'input window, operand 2, single buffered']
    #allocation7 [shape = 's32[1]{0}', space=sflag, size = 0x4, scoped, tag = 'scoped memory for tpu_custom_call.1']
    #allocation8 [shape = 'u8[4096]{0}', space=vmem, size = 0x1000, scoped, tag = 'input window, operand 3, single buffered']
    #allocation9 [shape = 'u8[8192]{0}', space=vmem, size = 0x2000, scoped, tag = 'input window, operand 4, single buffered']
    #allocation10 [shape = 's32[1]{0}', space=sflag, size = 0x4, scoped, tag = 'scoped memory for tpu_custom_call.1']
    #allocation11 [shape = 'u8[12288]{0}', space=vmem, size = 0x3000, scoped, tag = 'input window, operand 5, single buffered']
    #allocation12 [shape = 'u8[4096]{0}', space=vmem, size = 0x1000, scoped, tag = 'input window, operand 6, single buffered']
    #allocation13 [shape = 's32[1]{0}', space=sflag, size = 0x4, scoped, tag = 'scoped memory for tpu_custom_call.1']
    #allocation14 [shape = 'u8[16384]{0}', space=vmem, size = 0x4000, scoped, tag = 'output window, operand 0']
    %13 = vsyncpa [#allocation4], 0
    %s14 = scalar_lea.sflag [#allocation4], 1
    %15 = vsyncpa %s14, 0
    %16 = vsyncpa [#allocation7], 0
    %17 = vsyncpa [#allocation10], 0
    %18 = vsyncpa [#allocation13], 0
    %19 = vsyncpa [#allocation5], 0
    %s20 = scalar_lea.sflag [#allocation5], 1
    %21 = vsyncpa %s20, 0
    loop: start=0, step=1, limit=4
    $region2: #{tpu_custom_call.1} parent=1 // loop_pre_header
      _
    $region3: #{tpu_custom_call.1} parent=1 // loop_header
      %s23 = sphi 0, %s27
      %p24 = scmp.ge.s32.totalorder %s23, 4
      %s31 = sphi 0, %s31
      %s33 = sphi 0, %s31
      %s34 = sphi 0, %s33
      %s48 = sphi 0, %s34
      %s54 = sphi 0, %s56
      %s57 = sphi 0, %s54
      %s58 = sphi 0, %s57
      %s74 = sphi 0, %s58
      %s78 = sphi 0, %s78
      %s80 = sphi 0, %s78
      %s81 = sphi 0, %s80
      %s95 = sphi 0, %s81
      %s99 = sphi 0, %s99
      %s101 = sphi 0, %s99
      %s102 = sphi 0, %s101
      %s116 = sphi 0, %s102
      %s120 = sphi 0, %s120
      %s122 = sphi 0, %s120
      %s123 = sphi 0, %s122
      %s137 = sphi 0, %s123
      %s141 = sphi 0, %s141
      %s143 = sphi 0, %s141
      %s144 = sphi 0, %s143
      %s158 = sphi 0, %s144
      %s162 = sphi 0, %s162
      %s164 = sphi 0, %s162
      %s165 = sphi 0, %s164
      %s179 = sphi 0, %s165
      %s185 = sphi 0, %s187
      %s188 = sphi 0, %s185
      %s189 = sphi 0, %s188
      %s205 = sphi 0, %s189
    $region4: #{tpu_custom_call.1} parent=1 // loop_header_branch
      %26 = sbr.rel (%p24) target = $region8
    $region5: #{tpu_custom_call.1} parent=1 // loop_body
      %s28 = ssub.s32 %s23, 1
      %s29 = ssub.s32 %s23, 2
      %s30 = sadd.s32 %s23, 1
      %s32 = sadd.s32 %s31, 1
      %p35 = scmp.eq.s32.totalorder %s23, 1
      %p36 = scmp.ne.s32.totalorder %s31, %s33
      %p37 = scmp.eq.s32.totalorder %s23, 0
      %p38 = por %p36, %p37
      %p39 = scmp.ne.s32.totalorder %s31, %s33
      %p40 = scmp.eq.s32.totalorder %s28, 1
      %p41 = por %p39, %p40
      %p42 = scmp.ne.s32.totalorder %s33, %s34
      %p43 = scmp.eq.s32.totalorder %s28, 0
      %p44 = por %p42, %p43
      %p45 = scmp.ne.s32.totalorder %s33, %s34
      %p46 = scmp.eq.s32.totalorder %s29, 1
      %p47 = por %p45, %p46
      %p49 = scmp.ne.s32.totalorder %s34, %s48
      %p50 = scmp.eq.s32.totalorder %s29, 0
      %p51 = por %p49, %p50
      %s52 = ssub.s32 %s23, %s30
      %p53 = scmp.eq.s32.totalorder %s52, 0
      %s55 = sadd.s32 %s54, 1
      %s56 = scalar_select %p53, %s54, %s55
      %p59 = pneg %p53
      %p60 = scmp.eq.s32.totalorder %s23, 1
      %p61 = por %p59, %p60
      %p62 = scmp.ne.s32.totalorder %s54, %s57
      %p63 = scmp.eq.s32.totalorder %s23, 0
      %p64 = por %p62, %p63
      %p65 = scmp.ne.s32.totalorder %s54, %s57
      %p66 = scmp.eq.s32.totalorder %s28, 1
      %p67 = por %p65, %p66
      %p68 = scmp.ne.s32.totalorder %s57, %s58
      %p69 = scmp.eq.s32.totalorder %s28, 0
      %p70 = por %p68, %p69
      %p71 = scmp.ne.s32.totalorder %s57, %s58
      %p72 = scmp.eq.s32.totalorder %s29, 1
      %p73 = por %p71, %p72
      %p75 = scmp.ne.s32.totalorder %s58, %s74
      %p76 = scmp.eq.s32.totalorder %s29, 0
      %p77 = por %p75, %p76
      %s79 = sadd.s32 %s78, 1
      %p82 = scmp.eq.s32.totalorder %s23, 1
      %p83 = scmp.ne.s32.totalorder %s78, %s80
      %p84 = scmp.eq.s32.totalorder %s23, 0
      %p85 = por %p83, %p84
      %p86 = scmp.ne.s32.totalorder %s78, %s80
      %p87 = scmp.eq.s32.totalorder %s28, 1
      %p88 = por %p86, %p87
      %p89 = scmp.ne.s32.totalorder %s80, %s81
      %p90 = scmp.eq.s32.totalorder %s28, 0
      %p91 = por %p89, %p90
      %p92 = scmp.ne.s32.totalorder %s80, %s81
      %p93 = scmp.eq.s32.totalorder %s29, 1
      %p94 = por %p92, %p93
      %p96 = scmp.ne.s32.totalorder %s81, %s95
      %p97 = scmp.eq.s32.totalorder %s29, 0
      %p98 = por %p96, %p97
      %s100 = sadd.s32 %s99, 1
      %p103 = scmp.eq.s32.totalorder %s23, 1
      %p104 = scmp.ne.s32.totalorder %s99, %s101
      %p105 = scmp.eq.s32.totalorder %s23, 0
      %p106 = por %p104, %p105
      %p107 = scmp.ne.s32.totalorder %s99, %s101
      %p108 = scmp.eq.s32.totalorder %s28, 1
      %p109 = por %p107, %p108
      %p110 = scmp.ne.s32.totalorder %s101, %s102
      %p111 = scmp.eq.s32.totalorder %s28, 0
      %p112 = por %p110, %p111
      %p113 = scmp.ne.s32.totalorder %s101, %s102
      %p114 = scmp.eq.s32.totalorder %s29, 1
      %p115 = por %p113, %p114
      %p117 = scmp.ne.s32.totalorder %s102, %s116
      %p118 = scmp.eq.s32.totalorder %s29, 0
      %p119 = por %p117, %p118
      %s121 = sadd.s32 %s120, 1
      %p124 = scmp.eq.s32.totalorder %s23, 1
      %p125 = scmp.ne.s32.totalorder %s120, %s122
      %p126 = scmp.eq.s32.totalorder %s23, 0
      %p127 = por %p125, %p126
      %p128 = scmp.ne.s32.totalorder %s120, %s122
      %p129 = scmp.eq.s32.totalorder %s28, 1
      %p130 = por %p128, %p129
      %p131 = scmp.ne.s32.totalorder %s122, %s123
      %p132 = scmp.eq.s32.totalorder %s28, 0
      %p133 = por %p131, %p132
      %p134 = scmp.ne.s32.totalorder %s122, %s123
      %p135 = scmp.eq.s32.totalorder %s29, 1
      %p136 = por %p134, %p135
      %p138 = scmp.ne.s32.totalorder %s123, %s137
      %p139 = scmp.eq.s32.totalorder %s29, 0
      %p140 = por %p138, %p139
      %s142 = sadd.s32 %s141, 1
      %p145 = scmp.eq.s32.totalorder %s23, 1
      %p146 = scmp.ne.s32.totalorder %s141, %s143
      %p147 = scmp.eq.s32.totalorder %s23, 0
      %p148 = por %p146, %p147
      %p149 = scmp.ne.s32.totalorder %s141, %s143
      %p150 = scmp.eq.s32.totalorder %s28, 1
      %p151 = por %p149, %p150
      %p152 = scmp.ne.s32.totalorder %s143, %s144
      %p153 = scmp.eq.s32.totalorder %s28, 0
      %p154 = por %p152, %p153
      %p155 = scmp.ne.s32.totalorder %s143, %s144
      %p156 = scmp.eq.s32.totalorder %s29, 1
      %p157 = por %p155, %p156
      %p159 = scmp.ne.s32.totalorder %s144, %s158
      %p160 = scmp.eq.s32.totalorder %s29, 0
      %p161 = por %p159, %p160
      %s163 = sadd.s32 %s162, 1
      %p166 = scmp.eq.s32.totalorder %s23, 1
      %p167 = scmp.ne.s32.totalorder %s162, %s164
      %p168 = scmp.eq.s32.totalorder %s23, 0
      %p169 = por %p167, %p168
      %p170 = scmp.ne.s32.totalorder %s162, %s164
      %p171 = scmp.eq.s32.totalorder %s28, 1
      %p172 = por %p170, %p171
      %p173 = scmp.ne.s32.totalorder %s164, %s165
      %p174 = scmp.eq.s32.totalorder %s28, 0
      %p175 = por %p173, %p174
      %p176 = scmp.ne.s32.totalorder %s164, %s165
      %p177 = scmp.eq.s32.totalorder %s29, 1
      %p178 = por %p176, %p177
      %p180 = scmp.ne.s32.totalorder %s165, %s179
      %p181 = scmp.eq.s32.totalorder %s29, 0
      %p182 = por %p180, %p181
      %s183 = ssub.s32 %s23, %s30
      %p184 = scmp.eq.s32.totalorder %s183, 0
      %s186 = sadd.s32 %s185, 1
      %s187 = scalar_select %p184, %s185, %s186
      %p190 = pneg %p184
      %p191 = scmp.eq.s32.totalorder %s23, 1
      %p192 = por %p190, %p191
      %p193 = scmp.ne.s32.totalorder %s185, %s188
      %p194 = scmp.eq.s32.totalorder %s23, 0
      %p195 = por %p193, %p194
      %p196 = scmp.ne.s32.totalorder %s185, %s188
      %p197 = scmp.eq.s32.totalorder %s28, 1
      %p198 = por %p196, %p197
      %p199 = scmp.ne.s32.totalorder %s188, %s189
      %p200 = scmp.eq.s32.totalorder %s28, 0
      %p201 = por %p199, %p200
      %p202 = scmp.ne.s32.totalorder %s188, %s189
      %p203 = scmp.eq.s32.totalorder %s29, 1
      %p204 = por %p202, %p203
      %p206 = scmp.ne.s32.totalorder %s189, %s205
      %p207 = scmp.eq.s32.totalorder %s29, 0
      %p208 = por %p206, %p207
      %p209 = scmp.le.s32.totalorder 1, %s23
      %p210 = scmp.lt.s32.totalorder %s23, 3
      %p211 = pnand %p209, %p210
      %p212 = pneg %p211
      // Predicated region
      $region9: #{tpu_custom_call.1} parent=5 // pred_check
        _
      $region10: #{tpu_custom_call.1} parent=5 // pred_check_branch
        %214 = sbr.rel (%p211) target = $region12
      $region11: #{tpu_custom_call.1} parent=5 // pred_region
        %s215 = ssub.s32 %s23, 1
        // Predicated region
        $region13: #{tpu_custom_call.1} parent=11 // pred_check
          %p216 = pneg %p44
        $region14: #{tpu_custom_call.1} parent=11 // pred_check_branch
          %218 = sbr.rel (%p216) target = $region16
        $region15: #{tpu_custom_call.1} parent=11 // pred_region
          _
        $region16: #{tpu_custom_call.1} parent=11 // pred_fallthru
          _
        // Predicated region
        $region17: #{tpu_custom_call.1} parent=11 // pred_check
          %p219 = pneg %p91
        $region18: #{tpu_custom_call.1} parent=11 // pred_check_branch
          %221 = sbr.rel (%p219) target = $region20
        $region19: #{tpu_custom_call.1} parent=11 // pred_region
          %223 = vsyncadd [#allocation7], 0
          %s224 = sshll.u32 %s2, 4
          %s225 = int_to_ptr.hbm [resolvable:$true] %s224
          %s226 = sshll.u32 [#allocation6], 4
          %s227 = int_to_ptr.vmem [resolvable:$true] %s226
          %232 = dma.hbm_to_vmem [thread:$0]  %s225, 512, %s227, [#allocation7], 256, 256, 16
        $region20: #{tpu_custom_call.1} parent=11 // pred_fallthru
          _
        // Predicated region
        $region21: #{tpu_custom_call.1} parent=11 // pred_check
          %p233 = pneg %p112
        $region22: #{tpu_custom_call.1} parent=11 // pred_check_branch
          %235 = sbr.rel (%p233) target = $region24
        $region23: #{tpu_custom_call.1} parent=11 // pred_region
          %237 = vsyncadd [#allocation7], 0
          %s239 = sshll.u32 %s3, 4
          %s240 = int_to_ptr.hbm [resolvable:$true] %s239
          %s241 = sshll.u32 [#allocation8], 4
          %s242 = int_to_ptr.vmem [resolvable:$true] %s241
          %244 = dma.hbm_to_vmem [thread:$0]  %s240, 128, %s242, [#allocation7]
        $region24: #{tpu_custom_call.1} parent=11 // pred_fallthru
          _
        // Predicated region
        $region25: #{tpu_custom_call.1} parent=11 // pred_check
          %p245 = pneg %p133
        $region26: #{tpu_custom_call.1} parent=11 // pred_check_branch
          %247 = sbr.rel (%p245) target = $region28
        $region27: #{tpu_custom_call.1} parent=11 // pred_region
          %249 = vsyncadd [#allocation10], 0
          %s250 = sshll.u32 %s4, 4
          %s251 = int_to_ptr.hbm [resolvable:$true] %s250
          %s252 = sshll.u32 [#allocation9], 4
          %s253 = int_to_ptr.vmem [resolvable:$true] %s252
          %258 = dma.hbm_to_vmem [thread:$0]  %s251, 256, %s253, [#allocation10], 128, 128, 8
        $region28: #{tpu_custom_call.1} parent=11 // pred_fallthru
          _
        // Predicated region
        $region29: #{tpu_custom_call.1} parent=11 // pred_check
          %p259 = pneg %p154
        $region30: #{tpu_custom_call.1} parent=11 // pred_check_branch
          %261 = sbr.rel (%p259) target = $region32
        $region31: #{tpu_custom_call.1} parent=11 // pred_region
          %263 = vsyncadd [#allocation10], 0
          %s265 = sshll.u32 %s5, 4
          %s266 = int_to_ptr.hbm [resolvable:$true] %s265
          %s267 = sshll.u32 [#allocation11], 4
          %s268 = int_to_ptr.vmem [resolvable:$true] %s267
          %270 = dma.hbm_to_vmem [thread:$0]  %s266, 384, %s268, [#allocation10]
        $region32: #{tpu_custom_call.1} parent=11 // pred_fallthru
          _
        // Predicated region
        $region33: #{tpu_custom_call.1} parent=11 // pred_check
          %p271 = pneg %p175
        $region34: #{tpu_custom_call.1} parent=11 // pred_check_branch
          %273 = sbr.rel (%p271) target = $region36
        $region35: #{tpu_custom_call.1} parent=11 // pred_region
          %275 = vsyncadd [#allocation13], 0
          %s277 = sshll.u32 %s6, 4
          %s278 = int_to_ptr.hbm [resolvable:$true] %s277
          %s279 = sshll.u32 [#allocation12], 4
          %s280 = int_to_ptr.vmem [resolvable:$true] %s279
          %282 = dma.hbm_to_vmem [thread:$0]  %s278, 128, %s280, [#allocation13]
        $region36: #{tpu_custom_call.1} parent=11 // pred_fallthru
          _
      $region12: #{tpu_custom_call.1} parent=5 // pred_fallthru
        _
      %p283 = scmp.lt.s32.totalorder %s23, 2
      // Predicated region
      $region37: #{tpu_custom_call.1} parent=5 // pred_check
        %p284 = pneg %p283
      $region38: #{tpu_custom_call.1} parent=5 // pred_check_branch
        %286 = sbr.rel (%p284) target = $region40
      $region39: #{tpu_custom_call.1} parent=5 // pred_region
        // Predicated region
        $region41: #{tpu_custom_call.1} parent=39 // pred_check
          %p287 = pneg %p64
        $region42: #{tpu_custom_call.1} parent=39 // pred_check_branch
          %289 = sbr.rel (%p287) target = $region44
        $region43: #{tpu_custom_call.1} parent=39 // pred_region
          %s290 = sand.u32 %s54, 1
          %s291 = scalar_lea.sflag [#allocation4], %s290
          %s292 = sand.u32 %s54, 1
          %s293 = smul.addr %s292, 16
          %s294 = scalar_lea.vmem [#allocation3], %s293
          %s295 = smul.u32 2, %s23
          %297 = vsyncadd %s291, 0
          %s298 = smul.addr %s295, 8
          %s299 = scalar_lea.hbm %s1, %s298
          %s301 = sshll.u32 %s299, 4
          %s302 = int_to_ptr.hbm [resolvable:$true] %s301
          %s303 = sshll.u32 %s294, 4
          %s304 = int_to_ptr.vmem [resolvable:$true] %s303
          %306 = dma.hbm_to_vmem [thread:$0]  %s302, 256, %s304, %s291
        $region44: #{tpu_custom_call.1} parent=39 // pred_fallthru
          _
      $region40: #{tpu_custom_call.1} parent=5 // pred_fallthru
        _
      %p307 = scmp.le.s32.totalorder 1, %s23
      %p308 = scmp.lt.s32.totalorder %s23, 3
      %p309 = pnand %p307, %p308
      %p310 = pneg %p309
      // Predicated region
      $region45: #{tpu_custom_call.1} parent=5 // pred_check
        _
      $region46: #{tpu_custom_call.1} parent=5 // pred_check_branch
        %312 = sbr.rel (%p309) target = $region48
      $region47: #{tpu_custom_call.1} parent=5 // pred_region
        %s313 = ssub.s32 %s23, 1
        %s314 = sand.u32 %s57, 1
        %s315 = scalar_lea.sflag [#allocation4], %s314
        %s316 = sand.u32 %s57, 1
        %s317 = smul.addr %s316, 16
        %s318 = scalar_lea.vmem [#allocation3], %s317
        // Predicated region
        $region49: #{tpu_custom_call.1} parent=47 // pred_check
          %p319 = pneg %p70
        $region50: #{tpu_custom_call.1} parent=47 // pred_check_branch
          %321 = sbr.rel (%p319) target = $region52
        $region51: #{tpu_custom_call.1} parent=47 // pred_region
          %323 = dma.done %s315, 256
        $region52: #{tpu_custom_call.1} parent=47 // pred_fallthru
          _
        // Predicated region
        $region53: #{tpu_custom_call.1} parent=47 // pred_check
          %p324 = pneg %p91
        $region54: #{tpu_custom_call.1} parent=47 // pred_check_branch
          %326 = sbr.rel (%p324) target = $region56
        $region55: #{tpu_custom_call.1} parent=47 // pred_region
          %328 = dma.done [#allocation7], 512
        $region56: #{tpu_custom_call.1} parent=47 // pred_fallthru
          _
        // Predicated region
        $region57: #{tpu_custom_call.1} parent=47 // pred_check
          %p329 = pneg %p112
        $region58: #{tpu_custom_call.1} parent=47 // pred_check_branch
          %331 = sbr.rel (%p329) target = $region60
        $region59: #{tpu_custom_call.1} parent=47 // pred_region
          %333 = dma.done [#allocation7], 128
        $region60: #{tpu_custom_call.1} parent=47 // pred_fallthru
          _
        // Predicated region
        $region61: #{tpu_custom_call.1} parent=47 // pred_check
          %p334 = pneg %p133
        $region62: #{tpu_custom_call.1} parent=47 // pred_check_branch
          %336 = sbr.rel (%p334) target = $region64
        $region63: #{tpu_custom_call.1} parent=47 // pred_region
          %338 = dma.done [#allocation10], 256
        $region64: #{tpu_custom_call.1} parent=47 // pred_fallthru
          _
        // Predicated region
        $region65: #{tpu_custom_call.1} parent=47 // pred_check
          %p339 = pneg %p154
        $region66: #{tpu_custom_call.1} parent=47 // pred_check_branch
          %341 = sbr.rel (%p339) target = $region68
        $region67: #{tpu_custom_call.1} parent=47 // pred_region
          %343 = dma.done [#allocation10], 384
        $region68: #{tpu_custom_call.1} parent=47 // pred_fallthru
          _
        // Predicated region
        $region69: #{tpu_custom_call.1} parent=47 // pred_check
          %p344 = pneg %p175
        $region70: #{tpu_custom_call.1} parent=47 // pred_check_branch
          %346 = sbr.rel (%p344) target = $region72
        $region71: #{tpu_custom_call.1} parent=47 // pred_region
          %348 = dma.done [#allocation13], 128
        $region72: #{tpu_custom_call.1} parent=47 // pred_fallthru
          _
        %p349 = pneg %p44
        %p350 = pneg %p41
        %s351 = sand.u32 %s57, 1
        %s352 = scalar_lea.sflag [#allocation4], %s351
        %s353 = sand.u32 %s57, 1
        %s354 = smul.addr %s353, 16
        %s355 = scalar_lea.vmem [#allocation3], %s354
        %p356 = pneg %p70
        %p357 = pneg %p67
        %p358 = pneg %p91
        %p359 = pneg %p88
        %p360 = pneg %p112
        %p361 = pneg %p109
        %p362 = pneg %p133
        %p363 = pneg %p130
        %p364 = pneg %p154
        %p365 = pneg %p151
        %p366 = pneg %p175
        %p367 = pneg %p172
        %p368 = pneg %p201
        %p369 = pneg %p198
        %s370 = sand.u32 %s188, 1
        %s371 = scalar_lea.sflag [#allocation5], %s370
        %s372 = sand.u32 %s188, 1
        %s373 = smul.addr %s372, 16
        %s374 = scalar_lea.vmem [#allocation14], %s373
        %s375 = smul.u32 2, %s28
        %s376 = smul.u32 2, %s28
        %v377 = vld [vmem:[%s318] sm:$0xff]
        %v378 = vld [vmem:[%s318 + $0x8] sm:$0xff]
        %s379 = sld [smem:[#allocation2]]
        %v380 = vld [vmem:[#allocation6] ss:$8 sm:$0x3]
        %s381 = scalar_lea.vmem [#allocation6], 1
        %v382 = vld [vmem:[%s381] ss:$8 sm:$0x3]
        %s383 = scalar_lea.vmem [#allocation6], 2
        %v384 = vld [vmem:[%s383] ss:$8 sm:$0x3]
        %s385 = scalar_lea.vmem [#allocation6], 3
        %v386 = vld [vmem:[%s385] ss:$8 sm:$0x3]
        %s387 = scalar_lea.vmem [#allocation6], 5
        %v388 = vld [vmem:[%s387] ss:$8 sm:$0x3]
        %s389 = scalar_lea.vmem [#allocation6], 6
        %v390 = vld [vmem:[%s389] ss:$8 sm:$0x3]
        %s391 = scalar_lea.vmem [#allocation6], 7
        %v392 = vld [vmem:[%s391] ss:$8 sm:$0x3]
        %s393 = scalar_lea.vmem [#allocation6], 16
        %v394 = vld [vmem:[%s393] ss:$8 sm:$0x3]
        %v396 = vperm.slane %v380, 0
        %v397 = vperm.slane %v380, 1
        %v400 = vmul.f32 %v377, %v396
        %v401 = vmul.f32 %v378, %v397
        %402 = vrot.lane.b32.xlu0 %v400, 17
        %v403 = vpop.permute.xlu0 %402
        %404 = vrot.lane.b32.xlu0 %v401, 17
        %v405 = vpop.permute.xlu0 %404
        %v406 = vlaneseq
        %v407 = vand.u32 %v406, 127
        %vm408 = vcmp.lt.s32.totalorder %v407, 17
        %v409 = vsel %vm408, %v403, %v405
        %v410 = vsel %vm408, %v405, %v403
        %v412 = vperm.slane %v382, 0
        %v413 = vperm.slane %v382, 1
        %v416 = vmul.f32 %v377, %v412
        %v417 = vmul.f32 %v378, %v413
        %418 = vrot.lane.b32.xlu0 %v416, 16
        %v419 = vpop.permute.xlu0 %418
        %420 = vrot.lane.b32.xlu0 %v417, 16
        %v421 = vpop.permute.xlu0 %420
        %vm422 = vcmp.lt.s32.totalorder %v407, 16
        %v423 = vsel %vm422, %v419, %v421
        %v424 = vsel %vm422, %v421, %v419
        %v426 = vperm.slane %v384, 0
        %v427 = vperm.slane %v384, 1
        %v430 = vmul.f32 %v377, %v426
        %v431 = vmul.f32 %v378, %v427
        %432 = vrot.lane.b32.xlu0 %v430, 15
        %v433 = vpop.permute.xlu0 %432
        %434 = vrot.lane.b32.xlu0 %v431, 15
        %v435 = vpop.permute.xlu0 %434
        %vm436 = vcmp.lt.s32.totalorder %v407, 15
        %v437 = vsel %vm436, %v433, %v435
        %v438 = vsel %vm436, %v435, %v433
        %v440 = vperm.slane %v386, 0
        %v441 = vperm.slane %v386, 1
        %v444 = vmul.f32 %v377, %v440
        %v445 = vmul.f32 %v378, %v441
        %446 = vrot.lane.b32.xlu0 %v444, 1
        %v447 = vpop.permute.xlu0 %446
        %448 = vrot.lane.b32.xlu0 %v445, 1
        %v449 = vpop.permute.xlu0 %448
        %vm450 = vcmp.lt.s32.totalorder %v407, 1
        %v451 = vsel %vm450, %v447, %v449
        %v452 = vsel %vm450, %v449, %v447
        %v454 = vperm.slane %v388, 0
        %v455 = vperm.slane %v388, 1
        %v458 = vmul.f32 %v377, %v454
        %v459 = vmul.f32 %v378, %v455
        %460 = vrot.lane.b32.xlu0 %v458, 127
        %v461 = vpop.permute.xlu0 %460
        %462 = vrot.lane.b32.xlu0 %v459, 127
        %v463 = vpop.permute.xlu0 %462
        %vm464 = vcmp.lt.s32.totalorder %v407, 127
        %v465 = vsel %vm464, %v461, %v463
        %v466 = vsel %vm464, %v463, %v461
        %v468 = vperm.slane %v390, 0
        %v469 = vperm.slane %v390, 1
        %v472 = vmul.f32 %v377, %v468
        %v473 = vmul.f32 %v378, %v469
        %474 = vrot.lane.b32.xlu0 %v472, 113
        %v475 = vpop.permute.xlu0 %474
        %476 = vrot.lane.b32.xlu0 %v473, 113
        %v477 = vpop.permute.xlu0 %476
        %vm478 = vcmp.lt.s32.totalorder %v407, 113
        %v479 = vsel %vm478, %v475, %v477
        %v480 = vsel %vm478, %v477, %v475
        %v482 = vperm.slane %v392, 0
        %v483 = vperm.slane %v392, 1
        %v486 = vmul.f32 %v377, %v482
        %v487 = vmul.f32 %v378, %v483
        %488 = vrot.lane.b32.xlu0 %v486, 112
        %v489 = vpop.permute.xlu0 %488
        %490 = vrot.lane.b32.xlu0 %v487, 112
        %v491 = vpop.permute.xlu0 %490
        %vm492 = vcmp.lt.s32.totalorder %v407, 112
        %v493 = vsel %vm492, %v489, %v491
        %v494 = vsel %vm492, %v491, %v489
        %v496 = vperm.slane %v394, 0
        %v497 = vperm.slane %v394, 1
        %v500 = vmul.f32 %v377, %v496
        %v501 = vmul.f32 %v378, %v497
        %502 = vrot.lane.b32.xlu0 %v500, 111
        %v503 = vpop.permute.xlu0 %502
        %504 = vrot.lane.b32.xlu0 %v501, 111
        %v505 = vpop.permute.xlu0 %504
        %vm506 = vcmp.lt.s32.totalorder %v407, 111
        %v507 = vsel %vm506, %v503, %v505
        %v508 = vsel %vm506, %v505, %v503
        %v509 = vld [vmem:[#allocation8] sm:$0xff]
        %vm510 = vcmask 588800
        %v512 = vsel %vm510, %v509, 0
        %514 = vmatpush.msra.mxu0 0.0
        %515 = vmatpush.msra.mxu0 0.0
        %516 = vmatpush.msra.mxu0 0.0
        %517 = vmatpush.msra.mxu0 0.0
        %518 = vmatpush.msra.mxu0 0.0
        %519 = vmatpush.msra.mxu0 0.0
        %520 = vmatpush.msra.mxu0 0.0
        %521 = vmatpush.msra.mxu0 %v507
        %522 = vmatpush.msra.mxu0 %v493
        %523 = vmatpush.msra.mxu0 %v479
        %524 = vmatpush.msra.mxu0 %v465
        %525 = vmatpush.msra.mxu0 %v377
        %526 = vmatpush.msra.mxu0 %v452
        %527 = vmatpush.msra.mxu0 %v438
        %528 = vmatpush.msra.mxu0 %v424
        %529 = vmatpush.msra.mxu0 %v410
        %530 = vmatmul.f32.gmra.mxu0 %v512
        %v531 = vpop.f32.mrf.mxu0
        %v532 = vadd.f32 0.0, %v531
        %533 = vdwg.mxu0
        %534 = vmatpush.msra.mxu0 0.0
        %535 = vmatpush.msra.mxu0 0.0
        %536 = vmatpush.msra.mxu0 0.0
        %537 = vmatpush.msra.mxu0 0.0
        %538 = vmatpush.msra.mxu0 0.0
        %539 = vmatpush.msra.mxu0 0.0
        %540 = vmatpush.msra.mxu0 0.0
        %541 = vmatpush.msra.mxu0 %v508
        %542 = vmatpush.msra.mxu0 %v494
        %543 = vmatpush.msra.mxu0 %v480
        %544 = vmatpush.msra.mxu0 %v466
        %545 = vmatpush.msra.mxu0 %v378
        %546 = vmatpush.msra.mxu0 %v451
        %547 = vmatpush.msra.mxu0 %v437
        %548 = vmatpush.msra.mxu0 %v423
        %549 = vmatpush.msra.mxu0 %v409
        %550 = vmatmul.f32.gmra.mxu0 %v512
        %v551 = vpop.f32.mrf.mxu0
        %v552 = vadd.f32 0.0, %v551
        %553 = vdwg.mxu0
        %v554 = vmax.f32 %v532, 0.0
        %v555 = vmax.f32 %v552, 0.0
        %v556 = vmul.f32 %v554, %v396
        %v557 = vmul.f32 %v555, %v397
        %558 = vrot.lane.b32.xlu0 %v556, 17
        %v559 = vpop.permute.xlu0 %558
        %560 = vrot.lane.b32.xlu0 %v557, 17
        %v561 = vpop.permute.xlu0 %560
        %v562 = vsel %vm408, %v559, %v561
        %v563 = vsel %vm408, %v561, %v559
        %v564 = vmul.f32 %v554, %v412
        %v565 = vmul.f32 %v555, %v413
        %566 = vrot.lane.b32.xlu0 %v564, 16
        %v567 = vpop.permute.xlu0 %566
        %568 = vrot.lane.b32.xlu0 %v565, 16
        %v569 = vpop.permute.xlu0 %568
        %v570 = vsel %vm422, %v567, %v569
        %v571 = vsel %vm422, %v569, %v567
        %v572 = vmul.f32 %v554, %v426
        %v573 = vmul.f32 %v555, %v427
        %574 = vrot.lane.b32.xlu0 %v572, 15
        %v575 = vpop.permute.xlu0 %574
        %576 = vrot.lane.b32.xlu0 %v573, 15
        %v577 = vpop.permute.xlu0 %576
        %v578 = vsel %vm436, %v575, %v577
        %v579 = vsel %vm436, %v577, %v575
        %v580 = vmul.f32 %v554, %v440
        %v581 = vmul.f32 %v555, %v441
        %582 = vrot.lane.b32.xlu0 %v580, 1
        %v583 = vpop.permute.xlu0 %582
        %584 = vrot.lane.b32.xlu0 %v581, 1
        %v585 = vpop.permute.xlu0 %584
        %v586 = vsel %vm450, %v583, %v585
        %v587 = vsel %vm450, %v585, %v583
        %v588 = vmul.f32 %v554, %v454
        %v589 = vmul.f32 %v555, %v455
        %590 = vrot.lane.b32.xlu0 %v588, 127
        %v591 = vpop.permute.xlu0 %590
        %592 = vrot.lane.b32.xlu0 %v589, 127
        %v593 = vpop.permute.xlu0 %592
        %v594 = vsel %vm464, %v591, %v593
        %v595 = vsel %vm464, %v593, %v591
        %v596 = vmul.f32 %v554, %v468
        %v597 = vmul.f32 %v555, %v469
        %598 = vrot.lane.b32.xlu0 %v596, 113
        %v599 = vpop.permute.xlu0 %598
        %600 = vrot.lane.b32.xlu0 %v597, 113
        %v601 = vpop.permute.xlu0 %600
        %v602 = vsel %vm478, %v599, %v601
        %v603 = vsel %vm478, %v601, %v599
        %v604 = vmul.f32 %v554, %v482
        %v605 = vmul.f32 %v555, %v483
        %606 = vrot.lane.b32.xlu0 %v604, 112
        %v607 = vpop.permute.xlu0 %606
        %608 = vrot.lane.b32.xlu0 %v605, 112
        %v609 = vpop.permute.xlu0 %608
        %v610 = vsel %vm492, %v607, %v609
        %v611 = vsel %vm492, %v609, %v607
        %v612 = vmul.f32 %v554, %v496
        %v613 = vmul.f32 %v555, %v497
        %614 = vrot.lane.b32.xlu0 %v612, 111
        %v615 = vpop.permute.xlu0 %614
        %616 = vrot.lane.b32.xlu0 %v613, 111
        %v617 = vpop.permute.xlu0 %616
        %v618 = vsel %vm506, %v615, %v617
        %v619 = vsel %vm506, %v617, %v615
        %v620 = vld [vmem:[#allocation9] sm:$0xff]
        %v621 = vld [vmem:[#allocation9 + $0x8] sm:$0xff]
        %v623 = vsel %vm510, %v620, 0
        %v626 = vsel %vm510, %v621, 0
        %628 = vmatpush.msra.mxu0 0.0
        %629 = vmatpush.msra.mxu0 0.0
        %630 = vmatpush.msra.mxu0 0.0
        %631 = vmatpush.msra.mxu0 0.0
        %632 = vmatpush.msra.mxu0 0.0
        %633 = vmatpush.msra.mxu0 0.0
        %634 = vmatpush.msra.mxu0 0.0
        %635 = vmatpush.msra.mxu0 %v618
        %636 = vmatpush.msra.mxu0 %v610
        %637 = vmatpush.msra.mxu0 %v602
        %638 = vmatpush.msra.mxu0 %v594
        %639 = vmatpush.msra.mxu0 %v554
        %640 = vmatpush.msra.mxu0 %v587
        %641 = vmatpush.msra.mxu0 %v579
        %642 = vmatpush.msra.mxu0 %v571
        %643 = vmatpush.msra.mxu0 %v563
        %644 = vmatmul.f32.gmra.mxu0 %v623
        %v645 = vpop.f32.mrf.mxu0
        %v646 = vadd.f32 0.0, %v645
        %647 = vmatmul.f32.gmra.mxu0 %v626
        %v648 = vpop.f32.mrf.mxu0
        %v649 = vadd.f32 0.0, %v648
        %650 = vdwg.mxu0
        %651 = vmatpush.msra.mxu0 0.0
        %652 = vmatpush.msra.mxu0 0.0
        %653 = vmatpush.msra.mxu0 0.0
        %654 = vmatpush.msra.mxu0 0.0
        %655 = vmatpush.msra.mxu0 0.0
        %656 = vmatpush.msra.mxu0 0.0
        %657 = vmatpush.msra.mxu0 0.0
        %658 = vmatpush.msra.mxu0 %v619
        %659 = vmatpush.msra.mxu0 %v611
        %660 = vmatpush.msra.mxu0 %v603
        %661 = vmatpush.msra.mxu0 %v595
        %662 = vmatpush.msra.mxu0 %v555
        %663 = vmatpush.msra.mxu0 %v586
        %664 = vmatpush.msra.mxu0 %v578
        %665 = vmatpush.msra.mxu0 %v570
        %666 = vmatpush.msra.mxu0 %v562
        %667 = vmatmul.f32.gmra.mxu0 %v623
        %v668 = vpop.f32.mrf.mxu0
        %v669 = vadd.f32 0.0, %v668
        %670 = vmatmul.f32.gmra.mxu0 %v626
        %v671 = vpop.f32.mrf.mxu0
        %v672 = vadd.f32 0.0, %v671
        %673 = vdwg.mxu0
        %v674 = vmax.f32 %v646, 0.0
        %v675 = vmax.f32 %v669, 0.0
        %v676 = vmax.f32 %v649, 0.0
        %v677 = vmax.f32 %v672, 0.0
        %v678 = vstv %s379
        %v679 = vmul.f32 %v678, %v674
        %v680 = vmul.f32 %v678, %v675
        %v681 = vtanh.pop %v676
        %v682 = vtanh.pop %v677
        %v683 = vand.u32 2147483647, %v676
        %vm684 = vcmp.le.f32.partialorder %v683, 0.7853982
        %vm685 = vcmp.lt.s32.totalorder %v676, 0
        %v686 = vand.u32 %v676, 2139095040
        %v687 = vshrl.u32 %v686, 23
        %v688 = vsub.s32 %v687, 127
        %v689 = vand.u32 2147483647, %v676
        %v690 = vand.u32 %v689, 8388607
        %v691 = vor.u32 %v690, 8388608
        %v692 = vsub.s32 0, %v691
        %v693 = vadd.s32 %v688, 1
        %vm694 = vcmp.gt.s32.totalorder %v693, 0
        %v695 = vsel %vm694, %v693, 0
        %v696 = vshrl.u32 %v695, 5
        %v697 = vand.u32 %v695, 31
        %v698 = vsub.s32 32, %v697
        %v699 = vshrl.u32 683565275, %v698
        %v700 = vshll.u32 683565275, %v697
        %v701 = vshrl.u32 2475754826, %v698
        %v702 = vor.u32 %v700, %v701
        %v703 = vshll.u32 2475754826, %v697
        %v704 = vshrl.u32 2131351028, %v698
        %v705 = vor.u32 %v703, %v704
        %v706 = vshll.u32 2131351028, %v697
        %v707 = vshrl.u32 2102212464, %v698
        %v708 = vor.u32 %v706, %v707
        %v709 = vshll.u32 2102212464, %v697
        %v710 = vshrl.u32 920167782, %v698
        %v711 = vor.u32 %v709, %v710
        %v712 = vshll.u32 920167782, %v697
        %v713 = vshrl.u32 1326507024, %v698
        %v714 = vor.u32 %v712, %v713
        %vm715 = vcmp.lt.s32.totalorder %v696, 1
        %vm716 = vcmp.lt.s32.totalorder %v696, 2
        %vm717 = vcmp.lt.s32.totalorder %v696, 3
        %vm718 = vcmp.lt.s32.totalorder %v696, 4
        %v719 = vsel %vm715, %v699, %v702
        %v720 = vsel %vm718, %v708, 2102212464
        %v721 = vsel %vm717, %v705, %v720
        %v722 = vsel %vm716, %v719, %v721
        %v723 = vsel %vm715, %v702, %v705
        %v724 = vsel %vm718, %v711, 920167782
        %v725 = vsel %vm717, %v708, %v724
        %v726 = vsel %vm716, %v723, %v725
        %v727 = vsel %vm715, %v705, %v708
        %v728 = vsel %vm718, %v714, 1326507024
        %v729 = vsel %vm717, %v711, %v728
        %v730 = vsel %vm716, %v727, %v729
        %v731 = vshll.u32 %v691, 8
        %v732 = vand.u32 %v731, 65535
        %v733 = vshrl.u32 %v731, 16
        %v734 = vand.u32 %v730, 65535
        %v735 = vshrl.u32 %v730, 16
        %v736 = vmul.u32 %v732, %v734
        %v737 = vmul.u32 %v732, %v735
        %v738 = vmul.u32 %v733, %v734
        %v739 = vmul.u32 %v733, %v735
        %v740 = vshll.u32 %v737, 16
        %v741 = vshrl.u32 %v737, 16
        %v742 = vshll.u32 %v738, 16
        %v743 = vshrl.u32 %v738, 16
        %vm744 = vc.u32 %v736, %v740
        %v745 = vsel %vm744, 1, 0
        %v746 = vadd.s32 %v736, %v740
        %v747 = vadd.s32 %v739, %v745
        %vm748 = vc.u32 %v746, %v742
        %v749 = vsel %vm748, 1, 0
        %v750 = vadd.s32 %v746, %v742
        %v751 = vadd.s32 %v747, %v749
        %v752 = vadd.s32 %v751, %v741
        %v753 = vadd.s32 %v752, %v743
        %v754 = vand.u32 %v731, 65535
        %v755 = vshrl.u32 %v731, 16
        %v756 = vand.u32 %v726, 65535
        %v757 = vshrl.u32 %v726, 16
        %v758 = vmul.u32 %v754, %v756
        %v759 = vmul.u32 %v754, %v757
        %v760 = vmul.u32 %v755, %v756
        %v761 = vmul.u32 %v755, %v757
        %v762 = vshll.u32 %v759, 16
        %v763 = vshrl.u32 %v759, 16
        %v764 = vshll.u32 %v760, 16
        %v765 = vshrl.u32 %v760, 16
        %vm766 = vc.u32 %v758, %v762
        %v767 = vsel %vm766, 1, 0
        %v768 = vadd.s32 %v758, %v762
        %v769 = vadd.s32 %v761, %v767
        %vm770 = vc.u32 %v768, %v764
        %v771 = vsel %vm770, 1, 0
        %v772 = vadd.s32 %v768, %v764
        %v773 = vadd.s32 %v769, %v771
        %v774 = vadd.s32 %v773, %v763
        %v775 = vadd.s32 %v774, %v765
        %v776 = vmul.u32 %v731, %v722
        %v777 = vadd.s32 %v753, %v772
        %vm778 = vc.u32 %v753, %v772
        %v779 = vadd.s32 %v775, 1
        %v780 = vsel %vm778, %v779, %v775
        %v781 = vadd.s32 %v776, %v780
        %v782 = vadd.s32 %v781, 536870912
        %v783 = vshrl.u32 %v782, 30
        %v784 = vshll.u32 %v783, 30
        %v785 = vsub.s32 %v781, %v784
        %vm786 = vcmp.lt.s32.totalorder %v785, 0
        %v787 = vsub.s32 0, %v785
        %v788 = vsel %vm786, %v787, %v785
        %v789 = vclz %v788
        %v790 = vsub.s32 %v789, 2
        %vm791 = vcmp.gt.s32.totalorder 0, %v790
        %v792 = vsel %vm791, 0, %v790
        %v793 = vsub.s32 32, %v792
        %v794 = vshll.u32 %v785, %v792
        %v795 = vshrl.u32 %v777, %v793
        %v796 = vor.u32 %v794, %v795
        %v797 = vsub.s32 4294967266, %v792
        %v798 = vadd.s32 %v797, 127
        %v799 = vshll.u32 %v798, 23
        %v800 = vor.u32 4788187, %v799
        %v801 = vand.u32 2147483647, %v800
        %v803 = vcvt.s32.f32 %v796
        %v804 = vmul.f32 %v803, %v801
        %v805 = vxor.u32 %v804, 2147483648
        %v806 = vsel %vm685, %v805, %v804
        %v807 = vsub.s32 4, %v783
        %v808 = vsel %vm685, %v807, %v783
        %v809 = vsel %vm684, %v676, %v806
        %v810 = vsel %vm684, 0, %v808
        %v811 = vmul.f32 %v809, %v809
        %v812 = vmul.f32 %v811, -0.001358992
        %v813 = vadd.f32 %v812, 0.041655596
        %v814 = vmul.f32 %v811, %v813
        %v815 = vadd.f32 %v814, -0.4999988
        %v816 = vmul.f32 %v811, %v815
        %v817 = vadd.f32 1.0, %v816
        %v818 = vmul.f32 %v809, %v809
        %v819 = vmul.f32 %v818, -0.00019511016
        %v820 = vadd.f32 %v819, 0.008332121
        %v821 = vmul.f32 %v818, %v820
        %v822 = vadd.f32 %v821, -0.16666654
        %v823 = vmul.f32 %v818, %v822
        %v824 = vadd.f32 %v823, 1.0
        %v825 = vmul.f32 %v824, %v809
        %vm826 = vweird.f32 %v676
        %v827 = vadd.s32 %v810, 3
        %v828 = vand.u32 %v827, 3
        %vm829 = vcmp.lt.s32.totalorder %v828, 2
        %vm830 = vcmp.eq.s32.totalorder %v828, 0
        %v831 = vxor.u32 %v825, 2147483648
        %v832 = vsel %vm830, %v817, %v831
        %vm833 = vcmp.eq.s32.totalorder %v828, 2
        %v834 = vxor.u32 %v817, 2147483648
        %v835 = vsel %vm833, %v834, %v825
        %v836 = vsel %vm829, %v832, %v835
        %v837 = vsel %vm826, nan, %v836
        %v838 = vand.u32 2147483647, %v677
        %vm839 = vcmp.le.f32.partialorder %v838, 0.7853982
        %vm840 = vcmp.lt.s32.totalorder %v677, 0
        %v841 = vand.u32 %v677, 2139095040
        %v842 = vshrl.u32 %v841, 23
        %v843 = vsub.s32 %v842, 127
        %v844 = vand.u32 2147483647, %v677
        %v845 = vand.u32 %v844, 8388607
        %v846 = vor.u32 %v845, 8388608
        %v847 = vsub.s32 0, %v846
        %v848 = vadd.s32 %v843, 1
        %vm849 = vcmp.gt.s32.totalorder %v848, 0
        %v850 = vsel %vm849, %v848, 0
        %v851 = vshrl.u32 %v850, 5
        %v852 = vand.u32 %v850, 31
        %v853 = vsub.s32 32, %v852
        %v854 = vshrl.u32 683565275, %v853
        %v855 = vshll.u32 683565275, %v852
        %v856 = vshrl.u32 2475754826, %v853
        %v857 = vor.u32 %v855, %v856
        %v858 = vshll.u32 2475754826, %v852
        %v859 = vshrl.u32 2131351028, %v853
        %v860 = vor.u32 %v858, %v859
        %v861 = vshll.u32 2131351028, %v852
        %v862 = vshrl.u32 2102212464, %v853
        %v863 = vor.u32 %v861, %v862
        %v864 = vshll.u32 2102212464, %v852
        %v865 = vshrl.u32 920167782, %v853
        %v866 = vor.u32 %v864, %v865
        %v867 = vshll.u32 920167782, %v852
        %v868 = vshrl.u32 1326507024, %v853
        %v869 = vor.u32 %v867, %v868
        %vm870 = vcmp.lt.s32.totalorder %v851, 1
        %vm871 = vcmp.lt.s32.totalorder %v851, 2
        %vm872 = vcmp.lt.s32.totalorder %v851, 3
        %vm873 = vcmp.lt.s32.totalorder %v851, 4
        %v874 = vsel %vm870, %v854, %v857
        %v875 = vsel %vm873, %v863, 2102212464
        %v876 = vsel %vm872, %v860, %v875
        %v877 = vsel %vm871, %v874, %v876
        %v878 = vsel %vm870, %v857, %v860
        %v879 = vsel %vm873, %v866, 920167782
        %v880 = vsel %vm872, %v863, %v879
        %v881 = vsel %vm871, %v878, %v880
        %v882 = vsel %vm870, %v860, %v863
        %v883 = vsel %vm873, %v869, 1326507024
        %v884 = vsel %vm872, %v866, %v883
        %v885 = vsel %vm871, %v882, %v884
        %v886 = vshll.u32 %v846, 8
        %v887 = vand.u32 %v886, 65535
        %v888 = vshrl.u32 %v886, 16
        %v889 = vand.u32 %v885, 65535
        %v890 = vshrl.u32 %v885, 16
        %v891 = vmul.u32 %v887, %v889
        %v892 = vmul.u32 %v887, %v890
        %v893 = vmul.u32 %v888, %v889
        %v894 = vmul.u32 %v888, %v890
        %v895 = vshll.u32 %v892, 16
        %v896 = vshrl.u32 %v892, 16
        %v897 = vshll.u32 %v893, 16
        %v898 = vshrl.u32 %v893, 16
        %vm899 = vc.u32 %v891, %v895
        %v900 = vsel %vm899, 1, 0
        %v901 = vadd.s32 %v891, %v895
        %v902 = vadd.s32 %v894, %v900
        %vm903 = vc.u32 %v901, %v897
        %v904 = vsel %vm903, 1, 0
        %v905 = vadd.s32 %v901, %v897
        %v906 = vadd.s32 %v902, %v904
        %v907 = vadd.s32 %v906, %v896
        %v908 = vadd.s32 %v907, %v898
        %v909 = vand.u32 %v886, 65535
        %v910 = vshrl.u32 %v886, 16
        %v911 = vand.u32 %v881, 65535
        %v912 = vshrl.u32 %v881, 16
        %v913 = vmul.u32 %v909, %v911
        %v914 = vmul.u32 %v909, %v912
        %v915 = vmul.u32 %v910, %v911
        %v916 = vmul.u32 %v910, %v912
        %v917 = vshll.u32 %v914, 16
        %v918 = vshrl.u32 %v914, 16
        %v919 = vshll.u32 %v915, 16
        %v920 = vshrl.u32 %v915, 16
        %vm921 = vc.u32 %v913, %v917
        %v922 = vsel %vm921, 1, 0
        %v923 = vadd.s32 %v913, %v917
        %v924 = vadd.s32 %v916, %v922
        %vm925 = vc.u32 %v923, %v919
        %v926 = vsel %vm925, 1, 0
        %v927 = vadd.s32 %v923, %v919
        %v928 = vadd.s32 %v924, %v926
        %v929 = vadd.s32 %v928, %v918
        %v930 = vadd.s32 %v929, %v920
        %v931 = vmul.u32 %v886, %v877
        %v932 = vadd.s32 %v908, %v927
        %vm933 = vc.u32 %v908, %v927
        %v934 = vadd.s32 %v930, 1
        %v935 = vsel %vm933, %v934, %v930
        %v936 = vadd.s32 %v931, %v935
        %v937 = vadd.s32 %v936, 536870912
        %v938 = vshrl.u32 %v937, 30
        %v939 = vshll.u32 %v938, 30
        %v940 = vsub.s32 %v936, %v939
        %vm941 = vcmp.lt.s32.totalorder %v940, 0
        %v942 = vsub.s32 0, %v940
        %v943 = vsel %vm941, %v942, %v940
        %v944 = vclz %v943
        %v945 = vsub.s32 %v944, 2
        %vm946 = vcmp.gt.s32.totalorder 0, %v945
        %v947 = vsel %vm946, 0, %v945
        %v948 = vsub.s32 32, %v947
        %v949 = vshll.u32 %v940, %v947
        %v950 = vshrl.u32 %v932, %v948
        %v951 = vor.u32 %v949, %v950
        %v952 = vsub.s32 4294967266, %v947
        %v953 = vadd.s32 %v952, 127
        %v954 = vshll.u32 %v953, 23
        %v955 = vor.u32 4788187, %v954
        %v956 = vand.u32 2147483647, %v955
        %v958 = vcvt.s32.f32 %v951
        %v959 = vmul.f32 %v958, %v956
        %v960 = vxor.u32 %v959, 2147483648
        %v961 = vsel %vm840, %v960, %v959
        %v962 = vsub.s32 4, %v938
        %v963 = vsel %vm840, %v962, %v938
        %v964 = vsel %vm839, %v677, %v961
        %v965 = vsel %vm839, 0, %v963
        %v966 = vmul.f32 %v964, %v964
        %v967 = vmul.f32 %v966, -0.001358992
        %v968 = vadd.f32 %v967, 0.041655596
        %v969 = vmul.f32 %v966, %v968
        %v970 = vadd.f32 %v969, -0.4999988
        %v971 = vmul.f32 %v966, %v970
        %v972 = vadd.f32 1.0, %v971
        %v973 = vmul.f32 %v964, %v964
        %v974 = vmul.f32 %v973, -0.00019511016
        %v975 = vadd.f32 %v974, 0.008332121
        %v976 = vmul.f32 %v973, %v975
        %v977 = vadd.f32 %v976, -0.16666654
        %v978 = vmul.f32 %v973, %v977
        %v979 = vadd.f32 %v978, 1.0
        %v980 = vmul.f32 %v979, %v964
        %vm981 = vweird.f32 %v677
        %v982 = vadd.s32 %v965, 3
        %v983 = vand.u32 %v982, 3
        %vm984 = vcmp.lt.s32.totalorder %v983, 2
        %vm985 = vcmp.eq.s32.totalorder %v983, 0
        %v986 = vxor.u32 %v980, 2147483648
        %v987 = vsel %vm985, %v972, %v986
        %vm988 = vcmp.eq.s32.totalorder %v983, 2
        %v989 = vxor.u32 %v972, 2147483648
        %v990 = vsel %vm988, %v989, %v980
        %v991 = vsel %vm984, %v987, %v990
        %v992 = vsel %vm981, nan, %v991
        %v993 = vmul.f32 %v679, %v837
        %v994 = vmul.f32 %v680, %v992
        %v995 = vmul.f32 %v993, 1.442695
        %v996 = vpow.pop %v995
        %v997 = vmul.f32 %v994, 1.442695
        %v998 = vpow.pop %v997
        %v999 = vsub.f32 0.0, %v679
        %v1000 = vsub.f32 0.0, %v680
        %v1001 = vand.u32 2147483647, %v676
        %vm1002 = vcmp.le.f32.partialorder %v1001, 0.7853982
        %vm1003 = vcmp.lt.s32.totalorder %v676, 0
        %v1004 = vand.u32 %v676, 2139095040
        %v1005 = vshrl.u32 %v1004, 23
        %v1006 = vsub.s32 %v1005, 127
        %v1007 = vand.u32 2147483647, %v676
        %v1008 = vand.u32 %v1007, 8388607
        %v1009 = vor.u32 %v1008, 8388608
        %v1010 = vsub.s32 0, %v1009
        %v1011 = vadd.s32 %v1006, 1
        %vm1012 = vcmp.gt.s32.totalorder %v1011, 0
        %v1013 = vsel %vm1012, %v1011, 0
        %v1014 = vshrl.u32 %v1013, 5
        %v1015 = vand.u32 %v1013, 31
        %v1016 = vsub.s32 32, %v1015
        %v1017 = vshrl.u32 683565275, %v1016
        %v1018 = vshll.u32 683565275, %v1015
        %v1019 = vshrl.u32 2475754826, %v1016
        %v1020 = vor.u32 %v1018, %v1019
        %v1021 = vshll.u32 2475754826, %v1015
        %v1022 = vshrl.u32 2131351028, %v1016
        %v1023 = vor.u32 %v1021, %v1022
        %v1024 = vshll.u32 2131351028, %v1015
        %v1025 = vshrl.u32 2102212464, %v1016
        %v1026 = vor.u32 %v1024, %v1025
        %v1027 = vshll.u32 2102212464, %v1015
        %v1028 = vshrl.u32 920167782, %v1016
        %v1029 = vor.u32 %v1027, %v1028
        %v1030 = vshll.u32 920167782, %v1015
        %v1031 = vshrl.u32 1326507024, %v1016
        %v1032 = vor.u32 %v1030, %v1031
        %vm1033 = vcmp.lt.s32.totalorder %v1014, 1
        %vm1034 = vcmp.lt.s32.totalorder %v1014, 2
        %vm1035 = vcmp.lt.s32.totalorder %v1014, 3
        %vm1036 = vcmp.lt.s32.totalorder %v1014, 4
        %v1037 = vsel %vm1033, %v1017, %v1020
        %v1038 = vsel %vm1036, %v1026, 2102212464
        %v1039 = vsel %vm1035, %v1023, %v1038
        %v1040 = vsel %vm1034, %v1037, %v1039
        %v1041 = vsel %vm1033, %v1020, %v1023
        %v1042 = vsel %vm1036, %v1029, 920167782
        %v1043 = vsel %vm1035, %v1026, %v1042
        %v1044 = vsel %vm1034, %v1041, %v1043
        %v1045 = vsel %vm1033, %v1023, %v1026
        %v1046 = vsel %vm1036, %v1032, 1326507024
        %v1047 = vsel %vm1035, %v1029, %v1046
        %v1048 = vsel %vm1034, %v1045, %v1047
        %v1049 = vshll.u32 %v1009, 8
        %v1050 = vand.u32 %v1049, 65535
        %v1051 = vshrl.u32 %v1049, 16
        %v1052 = vand.u32 %v1048, 65535
        %v1053 = vshrl.u32 %v1048, 16
        %v1054 = vmul.u32 %v1050, %v1052
        %v1055 = vmul.u32 %v1050, %v1053
        %v1056 = vmul.u32 %v1051, %v1052
        %v1057 = vmul.u32 %v1051, %v1053
        %v1058 = vshll.u32 %v1055, 16
        %v1059 = vshrl.u32 %v1055, 16
        %v1060 = vshll.u32 %v1056, 16
        %v1061 = vshrl.u32 %v1056, 16
        %vm1062 = vc.u32 %v1054, %v1058
        %v1063 = vsel %vm1062, 1, 0
        %v1064 = vadd.s32 %v1054, %v1058
        %v1065 = vadd.s32 %v1057, %v1063
        %vm1066 = vc.u32 %v1064, %v1060
        %v1067 = vsel %vm1066, 1, 0
        %v1068 = vadd.s32 %v1064, %v1060
        %v1069 = vadd.s32 %v1065, %v1067
        %v1070 = vadd.s32 %v1069, %v1059
        %v1071 = vadd.s32 %v1070, %v1061
        %v1072 = vand.u32 %v1049, 65535
        %v1073 = vshrl.u32 %v1049, 16
        %v1074 = vand.u32 %v1044, 65535
        %v1075 = vshrl.u32 %v1044, 16
        %v1076 = vmul.u32 %v1072, %v1074
        %v1077 = vmul.u32 %v1072, %v1075
        %v1078 = vmul.u32 %v1073, %v1074
        %v1079 = vmul.u32 %v1073, %v1075
        %v1080 = vshll.u32 %v1077, 16
        %v1081 = vshrl.u32 %v1077, 16
        %v1082 = vshll.u32 %v1078, 16
        %v1083 = vshrl.u32 %v1078, 16
        %vm1084 = vc.u32 %v1076, %v1080
        %v1085 = vsel %vm1084, 1, 0
        %v1086 = vadd.s32 %v1076, %v1080
        %v1087 = vadd.s32 %v1079, %v1085
        %vm1088 = vc.u32 %v1086, %v1082
        %v1089 = vsel %vm1088, 1, 0
        %v1090 = vadd.s32 %v1086, %v1082
        %v1091 = vadd.s32 %v1087, %v1089
        %v1092 = vadd.s32 %v1091, %v1081
        %v1093 = vadd.s32 %v1092, %v1083
        %v1094 = vmul.u32 %v1049, %v1040
        %v1095 = vadd.s32 %v1071, %v1090
        %vm1096 = vc.u32 %v1071, %v1090
        %v1097 = vadd.s32 %v1093, 1
        %v1098 = vsel %vm1096, %v1097, %v1093
        %v1099 = vadd.s32 %v1094, %v1098
        %v1100 = vadd.s32 %v1099, 536870912
        %v1101 = vshrl.u32 %v1100, 30
        %v1102 = vshll.u32 %v1101, 30
        %v1103 = vsub.s32 %v1099, %v1102
        %vm1104 = vcmp.lt.s32.totalorder %v1103, 0
        %v1105 = vsub.s32 0, %v1103
        %v1106 = vsel %vm1104, %v1105, %v1103
        %v1107 = vclz %v1106
        %v1108 = vsub.s32 %v1107, 2
        %vm1109 = vcmp.gt.s32.totalorder 0, %v1108
        %v1110 = vsel %vm1109, 0, %v1108
        %v1111 = vsub.s32 32, %v1110
        %v1112 = vshll.u32 %v1103, %v1110
        %v1113 = vshrl.u32 %v1095, %v1111
        %v1114 = vor.u32 %v1112, %v1113
        %v1115 = vsub.s32 4294967266, %v1110
        %v1116 = vadd.s32 %v1115, 127
        %v1117 = vshll.u32 %v1116, 23
        %v1118 = vor.u32 4788187, %v1117
        %v1119 = vand.u32 2147483647, %v1118
        %v1121 = vcvt.s32.f32 %v1114
        %v1122 = vmul.f32 %v1121, %v1119
        %v1123 = vxor.u32 %v1122, 2147483648
        %v1124 = vsel %vm1003, %v1123, %v1122
        %v1125 = vsub.s32 4, %v1101
        %v1126 = vsel %vm1003, %v1125, %v1101
        %v1127 = vsel %vm1002, %v676, %v1124
        %v1128 = vsel %vm1002, 0, %v1126
        %v1129 = vmul.f32 %v1127, %v1127
        %v1130 = vmul.f32 %v1129, -0.001358992
        %v1131 = vadd.f32 %v1130, 0.041655596
        %v1132 = vmul.f32 %v1129, %v1131
        %v1133 = vadd.f32 %v1132, -0.4999988
        %v1134 = vmul.f32 %v1129, %v1133
        %v1135 = vadd.f32 1.0, %v1134
        %v1136 = vmul.f32 %v1127, %v1127
        %v1137 = vmul.f32 %v1136, -0.00019511016
        %v1138 = vadd.f32 %v1137, 0.008332121
        %v1139 = vmul.f32 %v1136, %v1138
        %v1140 = vadd.f32 %v1139, -0.16666654
        %v1141 = vmul.f32 %v1136, %v1140
        %v1142 = vadd.f32 %v1141, 1.0
        %v1143 = vmul.f32 %v1142, %v1127
        %vm1144 = vweird.f32 %v676
        %v1145 = vand.u32 %v1128, 3
        %vm1146 = vcmp.lt.s32.totalorder %v1145, 2
        %vm1147 = vcmp.eq.s32.totalorder %v1145, 0
        %v1148 = vxor.u32 %v1143, 2147483648
        %v1149 = vsel %vm1147, %v1135, %v1148
        %vm1150 = vcmp.eq.s32.totalorder %v1145, 2
        %v1151 = vxor.u32 %v1135, 2147483648
        %v1152 = vsel %vm1150, %v1151, %v1143
        %v1153 = vsel %vm1146, %v1149, %v1152
        %v1154 = vsel %vm1144, nan, %v1153
        %v1155 = vand.u32 2147483647, %v677
        %vm1156 = vcmp.le.f32.partialorder %v1155, 0.7853982
        %vm1157 = vcmp.lt.s32.totalorder %v677, 0
        %v1158 = vand.u32 %v677, 2139095040
        %v1159 = vshrl.u32 %v1158, 23
        %v1160 = vsub.s32 %v1159, 127
        %v1161 = vand.u32 2147483647, %v677
        %v1162 = vand.u32 %v1161, 8388607
        %v1163 = vor.u32 %v1162, 8388608
        %v1164 = vsub.s32 0, %v1163
        %v1165 = vadd.s32 %v1160, 1
        %vm1166 = vcmp.gt.s32.totalorder %v1165, 0
        %v1167 = vsel %vm1166, %v1165, 0
        %v1168 = vshrl.u32 %v1167, 5
        %v1169 = vand.u32 %v1167, 31
        %v1170 = vsub.s32 32, %v1169
        %v1171 = vshrl.u32 683565275, %v1170
        %v1172 = vshll.u32 683565275, %v1169
        %v1173 = vshrl.u32 2475754826, %v1170
        %v1174 = vor.u32 %v1172, %v1173
        %v1175 = vshll.u32 2475754826, %v1169
        %v1176 = vshrl.u32 2131351028, %v1170
        %v1177 = vor.u32 %v1175, %v1176
        %v1178 = vshll.u32 2131351028, %v1169
        %v1179 = vshrl.u32 2102212464, %v1170
        %v1180 = vor.u32 %v1178, %v1179
        %v1181 = vshll.u32 2102212464, %v1169
        %v1182 = vshrl.u32 920167782, %v1170
        %v1183 = vor.u32 %v1181, %v1182
        %v1184 = vshll.u32 920167782, %v1169
        %v1185 = vshrl.u32 1326507024, %v1170
        %v1186 = vor.u32 %v1184, %v1185
        %vm1187 = vcmp.lt.s32.totalorder %v1168, 1
        %vm1188 = vcmp.lt.s32.totalorder %v1168, 2
        %vm1189 = vcmp.lt.s32.totalorder %v1168, 3
        %vm1190 = vcmp.lt.s32.totalorder %v1168, 4
        %v1191 = vsel %vm1187, %v1171, %v1174
        %v1192 = vsel %vm1190, %v1180, 2102212464
        %v1193 = vsel %vm1189, %v1177, %v1192
        %v1194 = vsel %vm1188, %v1191, %v1193
        %v1195 = vsel %vm1187, %v1174, %v1177
        %v1196 = vsel %vm1190, %v1183, 920167782
        %v1197 = vsel %vm1189, %v1180, %v1196
        %v1198 = vsel %vm1188, %v1195, %v1197
        %v1199 = vsel %vm1187, %v1177, %v1180
        %v1200 = vsel %vm1190, %v1186, 1326507024
        %v1201 = vsel %vm1189, %v1183, %v1200
        %v1202 = vsel %vm1188, %v1199, %v1201
        %v1203 = vshll.u32 %v1163, 8
        %v1204 = vand.u32 %v1203, 65535
        %v1205 = vshrl.u32 %v1203, 16
        %v1206 = vand.u32 %v1202, 65535
        %v1207 = vshrl.u32 %v1202, 16
        %v1208 = vmul.u32 %v1204, %v1206
        %v1209 = vmul.u32 %v1204, %v1207
        %v1210 = vmul.u32 %v1205, %v1206
        %v1211 = vmul.u32 %v1205, %v1207
        %v1212 = vshll.u32 %v1209, 16
        %v1213 = vshrl.u32 %v1209, 16
        %v1214 = vshll.u32 %v1210, 16
        %v1215 = vshrl.u32 %v1210, 16
        %vm1216 = vc.u32 %v1208, %v1212
        %v1217 = vsel %vm1216, 1, 0
        %v1218 = vadd.s32 %v1208, %v1212
        %v1219 = vadd.s32 %v1211, %v1217
        %vm1220 = vc.u32 %v1218, %v1214
        %v1221 = vsel %vm1220, 1, 0
        %v1222 = vadd.s32 %v1218, %v1214
        %v1223 = vadd.s32 %v1219, %v1221
        %v1224 = vadd.s32 %v1223, %v1213
        %v1225 = vadd.s32 %v1224, %v1215
        %v1226 = vand.u32 %v1203, 65535
        %v1227 = vshrl.u32 %v1203, 16
        %v1228 = vand.u32 %v1198, 65535
        %v1229 = vshrl.u32 %v1198, 16
        %v1230 = vmul.u32 %v1226, %v1228
        %v1231 = vmul.u32 %v1226, %v1229
        %v1232 = vmul.u32 %v1227, %v1228
        %v1233 = vmul.u32 %v1227, %v1229
        %v1234 = vshll.u32 %v1231, 16
        %v1235 = vshrl.u32 %v1231, 16
        %v1236 = vshll.u32 %v1232, 16
        %v1237 = vshrl.u32 %v1232, 16
        %vm1238 = vc.u32 %v1230, %v1234
        %v1239 = vsel %vm1238, 1, 0
        %v1240 = vadd.s32 %v1230, %v1234
        %v1241 = vadd.s32 %v1233, %v1239
        %vm1242 = vc.u32 %v1240, %v1236
        %v1243 = vsel %vm1242, 1, 0
        %v1244 = vadd.s32 %v1240, %v1236
        %v1245 = vadd.s32 %v1241, %v1243
        %v1246 = vadd.s32 %v1245, %v1235
        %v1247 = vadd.s32 %v1246, %v1237
        %v1248 = vmul.u32 %v1203, %v1194
        %v1249 = vadd.s32 %v1225, %v1244
        %vm1250 = vc.u32 %v1225, %v1244
        %v1251 = vadd.s32 %v1247, 1
        %v1252 = vsel %vm1250, %v1251, %v1247
        %v1253 = vadd.s32 %v1248, %v1252
        %v1254 = vadd.s32 %v1253, 536870912
        %v1255 = vshrl.u32 %v1254, 30
        %v1256 = vshll.u32 %v1255, 30
        %v1257 = vsub.s32 %v1253, %v1256
        %vm1258 = vcmp.lt.s32.totalorder %v1257, 0
        %v1259 = vsub.s32 0, %v1257
        %v1260 = vsel %vm1258, %v1259, %v1257
        %v1261 = vclz %v1260
        %v1262 = vsub.s32 %v1261, 2
        %vm1263 = vcmp.gt.s32.totalorder 0, %v1262
        %v1264 = vsel %vm1263, 0, %v1262
        %v1265 = vsub.s32 32, %v1264
        %v1266 = vshll.u32 %v1257, %v1264
        %v1267 = vshrl.u32 %v1249, %v1265
        %v1268 = vor.u32 %v1266, %v1267
        %v1269 = vsub.s32 4294967266, %v1264
        %v1270 = vadd.s32 %v1269, 127
        %v1271 = vshll.u32 %v1270, 23
        %v1272 = vor.u32 4788187, %v1271
        %v1273 = vand.u32 2147483647, %v1272
        %v1275 = vcvt.s32.f32 %v1268
        %v1276 = vmul.f32 %v1275, %v1273
        %v1277 = vxor.u32 %v1276, 2147483648
        %v1278 = vsel %vm1157, %v1277, %v1276
        %v1279 = vsub.s32 4, %v1255
        %v1280 = vsel %vm1157, %v1279, %v1255
        %v1281 = vsel %vm1156, %v677, %v1278
        %v1282 = vsel %vm1156, 0, %v1280
        %v1283 = vmul.f32 %v1281, %v1281
        %v1284 = vmul.f32 %v1283, -0.001358992
        %v1285 = vadd.f32 %v1284, 0.041655596
        %v1286 = vmul.f32 %v1283, %v1285
        %v1287 = vadd.f32 %v1286, -0.4999988
        %v1288 = vmul.f32 %v1283, %v1287
        %v1289 = vadd.f32 1.0, %v1288
        %v1290 = vmul.f32 %v1281, %v1281
        %v1291 = vmul.f32 %v1290, -0.00019511016
        %v1292 = vadd.f32 %v1291, 0.008332121
        %v1293 = vmul.f32 %v1290, %v1292
        %v1294 = vadd.f32 %v1293, -0.16666654
        %v1295 = vmul.f32 %v1290, %v1294
        %v1296 = vadd.f32 %v1295, 1.0
        %v1297 = vmul.f32 %v1296, %v1281
        %vm1298 = vweird.f32 %v677
        %v1299 = vand.u32 %v1282, 3
        %vm1300 = vcmp.lt.s32.totalorder %v1299, 2
        %vm1301 = vcmp.eq.s32.totalorder %v1299, 0
        %v1302 = vxor.u32 %v1297, 2147483648
        %v1303 = vsel %vm1301, %v1289, %v1302
        %vm1304 = vcmp.eq.s32.totalorder %v1299, 2
        %v1305 = vxor.u32 %v1289, 2147483648
        %v1306 = vsel %vm1304, %v1305, %v1297
        %v1307 = vsel %vm1300, %v1303, %v1306
        %v1308 = vsel %vm1298, nan, %v1307
        %v1309 = vmul.f32 %v999, %v1154
        %v1310 = vmul.f32 %v1000, %v1308
        %v1311 = vmul.f32 %v1309, 1.442695
        %v1312 = vpow.pop %v1311
        %v1313 = vmul.f32 %v1310, 1.442695
        %v1314 = vpow.pop %v1313
        %v1315 = vadd.f32 %v377, %v681
        %v1316 = vadd.f32 %v378, %v682
        %v1317 = vsub.f32 %v377, %v681
        %v1318 = vsub.f32 %v378, %v682
        %v1319 = vmul.f32 %v1315, %v996
        %v1320 = vmul.f32 %v1316, %v998
        %v1321 = vsub.f32 %v1319, %v681
        %v1322 = vsub.f32 %v1320, %v682
        %v1323 = vmul.f32 %v1315, %v1312
        %v1324 = vmul.f32 %v1316, %v1314
        %v1325 = vsub.f32 %v1323, %v681
        %v1326 = vsub.f32 %v1324, %v682
        %v1327 = vmul.f32 %v1317, %v996
        %v1328 = vmul.f32 %v1318, %v998
        %v1329 = vadd.f32 %v1327, %v681
        %v1330 = vadd.f32 %v1328, %v682
        %v1331 = vmul.f32 %v1317, %v1312
        %v1332 = vmul.f32 %v1318, %v1314
        %v1333 = vadd.f32 %v1331, %v681
        %v1334 = vadd.f32 %v1332, %v682
        %v1335 = vmul.f32 %v1321, %v396
        %v1336 = vmul.f32 %v1322, %v397
        %v1337 = vmul.f32 %v1325, %v396
        %v1338 = vmul.f32 %v1326, %v397
        %v1339 = vmul.f32 %v1329, %v396
        %v1340 = vmul.f32 %v1330, %v397
        %v1341 = vmul.f32 %v1333, %v396
        %v1342 = vmul.f32 %v1334, %v397
        %1343 = vrot.lane.b32.xlu0 %v1335, 17
        %v1344 = vpop.permute.xlu0 %1343
        %1345 = vrot.lane.b32.xlu0 %v1337, 17
        %v1346 = vpop.permute.xlu0 %1345
        %1347 = vrot.lane.b32.xlu0 %v1339, 17
        %v1348 = vpop.permute.xlu0 %1347
        %1349 = vrot.lane.b32.xlu0 %v1341, 17
        %v1350 = vpop.permute.xlu0 %1349
        %1351 = vrot.lane.b32.xlu0 %v1336, 17
        %v1352 = vpop.permute.xlu0 %1351
        %1353 = vrot.lane.b32.xlu0 %v1338, 17
        %v1354 = vpop.permute.xlu0 %1353
        %1355 = vrot.lane.b32.xlu0 %v1340, 17
        %v1356 = vpop.permute.xlu0 %1355
        %1357 = vrot.lane.b32.xlu0 %v1342, 17
        %v1358 = vpop.permute.xlu0 %1357
        %v1359 = vsel %vm408, %v1344, %v1352
        %v1360 = vsel %vm408, %v1346, %v1354
        %v1361 = vsel %vm408, %v1348, %v1356
        %v1362 = vsel %vm408, %v1350, %v1358
        %v1363 = vsel %vm408, %v1352, %v1344
        %v1364 = vsel %vm408, %v1354, %v1346
        %v1365 = vsel %vm408, %v1356, %v1348
        %v1366 = vsel %vm408, %v1358, %v1350
        %v1367 = vmul.f32 %v1321, %v412
        %v1368 = vmul.f32 %v1322, %v413
        %v1369 = vmul.f32 %v1325, %v412
        %v1370 = vmul.f32 %v1326, %v413
        %v1371 = vmul.f32 %v1329, %v412
        %v1372 = vmul.f32 %v1330, %v413
        %v1373 = vmul.f32 %v1333, %v412
        %v1374 = vmul.f32 %v1334, %v413
        %1375 = vrot.lane.b32.xlu0 %v1367, 16
        %v1376 = vpop.permute.xlu0 %1375
        %1377 = vrot.lane.b32.xlu0 %v1369, 16
        %v1378 = vpop.permute.xlu0 %1377
        %1379 = vrot.lane.b32.xlu0 %v1371, 16
        %v1380 = vpop.permute.xlu0 %1379
        %1381 = vrot.lane.b32.xlu0 %v1373, 16
        %v1382 = vpop.permute.xlu0 %1381
        %1383 = vrot.lane.b32.xlu0 %v1368, 16
        %v1384 = vpop.permute.xlu0 %1383
        %1385 = vrot.lane.b32.xlu0 %v1370, 16
        %v1386 = vpop.permute.xlu0 %1385
        %1387 = vrot.lane.b32.xlu0 %v1372, 16
        %v1388 = vpop.permute.xlu0 %1387
        %1389 = vrot.lane.b32.xlu0 %v1374, 16
        %v1390 = vpop.permute.xlu0 %1389
        %v1391 = vsel %vm422, %v1376, %v1384
        %v1392 = vsel %vm422, %v1378, %v1386
        %v1393 = vsel %vm422, %v1380, %v1388
        %v1394 = vsel %vm422, %v1382, %v1390
        %v1395 = vsel %vm422, %v1384, %v1376
        %v1396 = vsel %vm422, %v1386, %v1378
        %v1397 = vsel %vm422, %v1388, %v1380
        %v1398 = vsel %vm422, %v1390, %v1382
        %v1399 = vmul.f32 %v1321, %v426
        %v1400 = vmul.f32 %v1322, %v427
        %v1401 = vmul.f32 %v1325, %v426
        %v1402 = vmul.f32 %v1326, %v427
        %v1403 = vmul.f32 %v1329, %v426
        %v1404 = vmul.f32 %v1330, %v427
        %v1405 = vmul.f32 %v1333, %v426
        %v1406 = vmul.f32 %v1334, %v427
        %1407 = vrot.lane.b32.xlu0 %v1399, 15
        %v1408 = vpop.permute.xlu0 %1407
        %1409 = vrot.lane.b32.xlu0 %v1401, 15
        %v1410 = vpop.permute.xlu0 %1409
        %1411 = vrot.lane.b32.xlu0 %v1403, 15
        %v1412 = vpop.permute.xlu0 %1411
        %1413 = vrot.lane.b32.xlu0 %v1405, 15
        %v1414 = vpop.permute.xlu0 %1413
        %1415 = vrot.lane.b32.xlu0 %v1400, 15
        %v1416 = vpop.permute.xlu0 %1415
        %1417 = vrot.lane.b32.xlu0 %v1402, 15
        %v1418 = vpop.permute.xlu0 %1417
        %1419 = vrot.lane.b32.xlu0 %v1404, 15
        %v1420 = vpop.permute.xlu0 %1419
        %1421 = vrot.lane.b32.xlu0 %v1406, 15
        %v1422 = vpop.permute.xlu0 %1421
        %v1423 = vsel %vm436, %v1408, %v1416
        %v1424 = vsel %vm436, %v1410, %v1418
        %v1425 = vsel %vm436, %v1412, %v1420
        %v1426 = vsel %vm436, %v1414, %v1422
        %v1427 = vsel %vm436, %v1416, %v1408
        %v1428 = vsel %vm436, %v1418, %v1410
        %v1429 = vsel %vm436, %v1420, %v1412
        %v1430 = vsel %vm436, %v1422, %v1414
        %v1431 = vmul.f32 %v1321, %v440
        %v1432 = vmul.f32 %v1322, %v441
        %v1433 = vmul.f32 %v1325, %v440
        %v1434 = vmul.f32 %v1326, %v441
        %v1435 = vmul.f32 %v1329, %v440
        %v1436 = vmul.f32 %v1330, %v441
        %v1437 = vmul.f32 %v1333, %v440
        %v1438 = vmul.f32 %v1334, %v441
        %1439 = vrot.lane.b32.xlu0 %v1431, 1
        %v1440 = vpop.permute.xlu0 %1439
        %1441 = vrot.lane.b32.xlu0 %v1433, 1
        %v1442 = vpop.permute.xlu0 %1441
        %1443 = vrot.lane.b32.xlu0 %v1435, 1
        %v1444 = vpop.permute.xlu0 %1443
        %1445 = vrot.lane.b32.xlu0 %v1437, 1
        %v1446 = vpop.permute.xlu0 %1445
        %1447 = vrot.lane.b32.xlu0 %v1432, 1
        %v1448 = vpop.permute.xlu0 %1447
        %1449 = vrot.lane.b32.xlu0 %v1434, 1
        %v1450 = vpop.permute.xlu0 %1449
        %1451 = vrot.lane.b32.xlu0 %v1436, 1
        %v1452 = vpop.permute.xlu0 %1451
        %1453 = vrot.lane.b32.xlu0 %v1438, 1
        %v1454 = vpop.permute.xlu0 %1453
        %v1455 = vsel %vm450, %v1440, %v1448
        %v1456 = vsel %vm450, %v1442, %v1450
        %v1457 = vsel %vm450, %v1444, %v1452
        %v1458 = vsel %vm450, %v1446, %v1454
        %v1459 = vsel %vm450, %v1448, %v1440
        %v1460 = vsel %vm450, %v1450, %v1442
        %v1461 = vsel %vm450, %v1452, %v1444
        %v1462 = vsel %vm450, %v1454, %v1446
        %v1463 = vmul.f32 %v1321, %v454
        %v1464 = vmul.f32 %v1322, %v455
        %v1465 = vmul.f32 %v1325, %v454
        %v1466 = vmul.f32 %v1326, %v455
        %v1467 = vmul.f32 %v1329, %v454
        %v1468 = vmul.f32 %v1330, %v455
        %v1469 = vmul.f32 %v1333, %v454
        %v1470 = vmul.f32 %v1334, %v455
        %1471 = vrot.lane.b32.xlu0 %v1463, 127
        %v1472 = vpop.permute.xlu0 %1471
        %1473 = vrot.lane.b32.xlu0 %v1465, 127
        %v1474 = vpop.permute.xlu0 %1473
        %1475 = vrot.lane.b32.xlu0 %v1467, 127
        %v1476 = vpop.permute.xlu0 %1475
        %1477 = vrot.lane.b32.xlu0 %v1469, 127
        %v1478 = vpop.permute.xlu0 %1477
        %1479 = vrot.lane.b32.xlu0 %v1464, 127
        %v1480 = vpop.permute.xlu0 %1479
        %1481 = vrot.lane.b32.xlu0 %v1466, 127
        %v1482 = vpop.permute.xlu0 %1481
        %1483 = vrot.lane.b32.xlu0 %v1468, 127
        %v1484 = vpop.permute.xlu0 %1483
        %1485 = vrot.lane.b32.xlu0 %v1470, 127
        %v1486 = vpop.permute.xlu0 %1485
        %v1487 = vsel %vm464, %v1472, %v1480
        %v1488 = vsel %vm464, %v1474, %v1482
        %v1489 = vsel %vm464, %v1476, %v1484
        %v1490 = vsel %vm464, %v1478, %v1486
        %v1491 = vsel %vm464, %v1480, %v1472
        %v1492 = vsel %vm464, %v1482, %v1474
        %v1493 = vsel %vm464, %v1484, %v1476
        %v1494 = vsel %vm464, %v1486, %v1478
        %v1495 = vmul.f32 %v1321, %v468
        %v1496 = vmul.f32 %v1322, %v469
        %v1497 = vmul.f32 %v1325, %v468
        %v1498 = vmul.f32 %v1326, %v469
        %v1499 = vmul.f32 %v1329, %v468
        %v1500 = vmul.f32 %v1330, %v469
        %v1501 = vmul.f32 %v1333, %v468
        %v1502 = vmul.f32 %v1334, %v469
        %1503 = vrot.lane.b32.xlu0 %v1495, 113
        %v1504 = vpop.permute.xlu0 %1503
        %1505 = vrot.lane.b32.xlu0 %v1497, 113
        %v1506 = vpop.permute.xlu0 %1505
        %1507 = vrot.lane.b32.xlu0 %v1499, 113
        %v1508 = vpop.permute.xlu0 %1507
        %1509 = vrot.lane.b32.xlu0 %v1501, 113
        %v1510 = vpop.permute.xlu0 %1509
        %1511 = vrot.lane.b32.xlu0 %v1496, 113
        %v1512 = vpop.permute.xlu0 %1511
        %1513 = vrot.lane.b32.xlu0 %v1498, 113
        %v1514 = vpop.permute.xlu0 %1513
        %1515 = vrot.lane.b32.xlu0 %v1500, 113
        %v1516 = vpop.permute.xlu0 %1515
        %1517 = vrot.lane.b32.xlu0 %v1502, 113
        %v1518 = vpop.permute.xlu0 %1517
        %v1519 = vsel %vm478, %v1504, %v1512
        %v1520 = vsel %vm478, %v1506, %v1514
        %v1521 = vsel %vm478, %v1508, %v1516
        %v1522 = vsel %vm478, %v1510, %v1518
        %v1523 = vsel %vm478, %v1512, %v1504
        %v1524 = vsel %vm478, %v1514, %v1506
        %v1525 = vsel %vm478, %v1516, %v1508
        %v1526 = vsel %vm478, %v1518, %v1510
        %v1527 = vmul.f32 %v1321, %v482
        %v1528 = vmul.f32 %v1322, %v483
        %v1529 = vmul.f32 %v1325, %v482
        %v1530 = vmul.f32 %v1326, %v483
        %v1531 = vmul.f32 %v1329, %v482
        %v1532 = vmul.f32 %v1330, %v483
        %v1533 = vmul.f32 %v1333, %v482
        %v1534 = vmul.f32 %v1334, %v483
        %1535 = vrot.lane.b32.xlu0 %v1527, 112
        %v1536 = vpop.permute.xlu0 %1535
        %1537 = vrot.lane.b32.xlu0 %v1529, 112
        %v1538 = vpop.permute.xlu0 %1537
        %1539 = vrot.lane.b32.xlu0 %v1531, 112
        %v1540 = vpop.permute.xlu0 %1539
        %1541 = vrot.lane.b32.xlu0 %v1533, 112
        %v1542 = vpop.permute.xlu0 %1541
        %1543 = vrot.lane.b32.xlu0 %v1528, 112
        %v1544 = vpop.permute.xlu0 %1543
        %1545 = vrot.lane.b32.xlu0 %v1530, 112
        %v1546 = vpop.permute.xlu0 %1545
        %1547 = vrot.lane.b32.xlu0 %v1532, 112
        %v1548 = vpop.permute.xlu0 %1547
        %1549 = vrot.lane.b32.xlu0 %v1534, 112
        %v1550 = vpop.permute.xlu0 %1549
        %v1551 = vsel %vm492, %v1536, %v1544
        %v1552 = vsel %vm492, %v1538, %v1546
        %v1553 = vsel %vm492, %v1540, %v1548
        %v1554 = vsel %vm492, %v1542, %v1550
        %v1555 = vsel %vm492, %v1544, %v1536
        %v1556 = vsel %vm492, %v1546, %v1538
        %v1557 = vsel %vm492, %v1548, %v1540
        %v1558 = vsel %vm492, %v1550, %v1542
        %v1559 = vmul.f32 %v1321, %v496
        %v1560 = vmul.f32 %v1322, %v497
        %v1561 = vmul.f32 %v1325, %v496
        %v1562 = vmul.f32 %v1326, %v497
        %v1563 = vmul.f32 %v1329, %v496
        %v1564 = vmul.f32 %v1330, %v497
        %v1565 = vmul.f32 %v1333, %v496
        %v1566 = vmul.f32 %v1334, %v497
        %1567 = vrot.lane.b32.xlu0 %v1559, 111
        %v1568 = vpop.permute.xlu0 %1567
        %1569 = vrot.lane.b32.xlu0 %v1561, 111
        %v1570 = vpop.permute.xlu0 %1569
        %1571 = vrot.lane.b32.xlu0 %v1563, 111
        %v1572 = vpop.permute.xlu0 %1571
        %1573 = vrot.lane.b32.xlu0 %v1565, 111
        %v1574 = vpop.permute.xlu0 %1573
        %1575 = vrot.lane.b32.xlu0 %v1560, 111
        %v1576 = vpop.permute.xlu0 %1575
        %1577 = vrot.lane.b32.xlu0 %v1562, 111
        %v1578 = vpop.permute.xlu0 %1577
        %1579 = vrot.lane.b32.xlu0 %v1564, 111
        %v1580 = vpop.permute.xlu0 %1579
        %1581 = vrot.lane.b32.xlu0 %v1566, 111
        %v1582 = vpop.permute.xlu0 %1581
        %v1583 = vsel %vm506, %v1568, %v1576
        %v1584 = vsel %vm506, %v1570, %v1578
        %v1585 = vsel %vm506, %v1572, %v1580
        %v1586 = vsel %vm506, %v1574, %v1582
        %v1587 = vsel %vm506, %v1576, %v1568
        %v1588 = vsel %vm506, %v1578, %v1570
        %v1589 = vsel %vm506, %v1580, %v1572
        %v1590 = vsel %vm506, %v1582, %v1574
        %v1591 = vld [vmem:[#allocation11] sm:$0xff]
        %v1592 = vld [vmem:[#allocation11 + $0x8] sm:$0xff]
        %v1593 = vld [vmem:[#allocation11 + $0x10] sm:$0xff]
        %vm1594 = vcmask 261120
        %v1596 = vsel %vm1594, %v1593, 0
        %1598 = vmatpush.msra.mxu0 %v1462
        %1599 = vmatpush.msra.mxu0 %v1461
        %1600 = vmatpush.msra.mxu0 %v1460
        %1601 = vmatpush.msra.mxu0 %v1459
        %1602 = vmatpush.msra.mxu0 %v1430
        %1603 = vmatpush.msra.mxu0 %v1429
        %1604 = vmatpush.msra.mxu0 %v1428
        %1605 = vmatpush.msra.mxu0 %v1427
        %1606 = vmatpush.msra.mxu0 %v1398
        %1607 = vmatpush.msra.mxu0 %v1397
        %1608 = vmatpush.msra.mxu0 %v1396
        %1609 = vmatpush.msra.mxu0 %v1395
        %1610 = vmatpush.msra.mxu0 %v1366
        %1611 = vmatpush.msra.mxu0 %v1365
        %1612 = vmatpush.msra.mxu0 %v1364
        %1613 = vmatpush.msra.mxu0 %v1363
        %1614 = vmatmul.f32.gmra.mxu0 %v1591
        %v1615 = vpop.f32.mrf.mxu0
        %v1616 = vadd.f32 0.0, %v1615
        %1617 = vdwg.mxu0
        %1618 = vmatpush.msra.mxu0 %v1554
        %1619 = vmatpush.msra.mxu0 %v1553
        %1620 = vmatpush.msra.mxu0 %v1552
        %1621 = vmatpush.msra.mxu0 %v1551
        %1622 = vmatpush.msra.mxu0 %v1522
        %1623 = vmatpush.msra.mxu0 %v1521
        %1624 = vmatpush.msra.mxu0 %v1520
        %1625 = vmatpush.msra.mxu0 %v1519
        %1626 = vmatpush.msra.mxu0 %v1490
        %1627 = vmatpush.msra.mxu0 %v1489
        %1628 = vmatpush.msra.mxu0 %v1488
        %1629 = vmatpush.msra.mxu0 %v1487
        %1630 = vmatpush.msra.mxu0 %v1333
        %1631 = vmatpush.msra.mxu0 %v1329
        %1632 = vmatpush.msra.mxu0 %v1325
        %1633 = vmatpush.msra.mxu0 %v1321
        %1634 = vmatmul.f32.gmra.mxu0 %v1592
        %v1635 = vpop.f32.mrf.mxu0
        %v1636 = vadd.f32 %v1616, %v1635
        %1637 = vdwg.mxu0
        %1638 = vmatpush.msra.mxu0 0.0
        %1639 = vmatpush.msra.mxu0 0.0
        %1640 = vmatpush.msra.mxu0 0.0
        %1641 = vmatpush.msra.mxu0 0.0
        %1642 = vmatpush.msra.mxu0 0.0
        %1643 = vmatpush.msra.mxu0 0.0
        %1644 = vmatpush.msra.mxu0 0.0
        %1645 = vmatpush.msra.mxu0 0.0
        %1646 = vmatpush.msra.mxu0 0.0
        %1647 = vmatpush.msra.mxu0 0.0
        %1648 = vmatpush.msra.mxu0 0.0
        %1649 = vmatpush.msra.mxu0 0.0
        %1650 = vmatpush.msra.mxu0 %v1586
        %1651 = vmatpush.msra.mxu0 %v1585
        %1652 = vmatpush.msra.mxu0 %v1584
        %1653 = vmatpush.msra.mxu0 %v1583
        %1654 = vmatmul.f32.gmra.mxu0 %v1596
        %v1655 = vpop.f32.mrf.mxu0
        %v1656 = vadd.f32 %v1636, %v1655
        %1657 = vdwg.mxu0
        %1658 = vmatpush.msra.mxu0 %v1458
        %1659 = vmatpush.msra.mxu0 %v1457
        %1660 = vmatpush.msra.mxu0 %v1456
        %1661 = vmatpush.msra.mxu0 %v1455
        %1662 = vmatpush.msra.mxu0 %v1426
        %1663 = vmatpush.msra.mxu0 %v1425
        %1664 = vmatpush.msra.mxu0 %v1424
        %1665 = vmatpush.msra.mxu0 %v1423
        %1666 = vmatpush.msra.mxu0 %v1394
        %1667 = vmatpush.msra.mxu0 %v1393
        %1668 = vmatpush.msra.mxu0 %v1392
        %1669 = vmatpush.msra.mxu0 %v1391
        %1670 = vmatpush.msra.mxu0 %v1362
        %1671 = vmatpush.msra.mxu0 %v1361
        %1672 = vmatpush.msra.mxu0 %v1360
        %1673 = vmatpush.msra.mxu0 %v1359
        %1674 = vmatmul.f32.gmra.mxu0 %v1591
        %v1675 = vpop.f32.mrf.mxu0
        %v1676 = vadd.f32 0.0, %v1675
        %1677 = vdwg.mxu0
        %1678 = vmatpush.msra.mxu0 %v1558
        %1679 = vmatpush.msra.mxu0 %v1557
        %1680 = vmatpush.msra.mxu0 %v1556
        %1681 = vmatpush.msra.mxu0 %v1555
        %1682 = vmatpush.msra.mxu0 %v1526
        %1683 = vmatpush.msra.mxu0 %v1525
        %1684 = vmatpush.msra.mxu0 %v1524
        %1685 = vmatpush.msra.mxu0 %v1523
        %1686 = vmatpush.msra.mxu0 %v1494
        %1687 = vmatpush.msra.mxu0 %v1493
        %1688 = vmatpush.msra.mxu0 %v1492
        %1689 = vmatpush.msra.mxu0 %v1491
        %1690 = vmatpush.msra.mxu0 %v1334
        %1691 = vmatpush.msra.mxu0 %v1330
        %1692 = vmatpush.msra.mxu0 %v1326
        %1693 = vmatpush.msra.mxu0 %v1322
        %1694 = vmatmul.f32.gmra.mxu0 %v1592
        %v1695 = vpop.f32.mrf.mxu0
        %v1696 = vadd.f32 %v1676, %v1695
        %1697 = vdwg.mxu0
        %1698 = vmatpush.msra.mxu0 0.0
        %1699 = vmatpush.msra.mxu0 0.0
        %1700 = vmatpush.msra.mxu0 0.0
        %1701 = vmatpush.msra.mxu0 0.0
        %1702 = vmatpush.msra.mxu0 0.0
        %1703 = vmatpush.msra.mxu0 0.0
        %1704 = vmatpush.msra.mxu0 0.0
        %1705 = vmatpush.msra.mxu0 0.0
        %1706 = vmatpush.msra.mxu0 0.0
        %1707 = vmatpush.msra.mxu0 0.0
        %1708 = vmatpush.msra.mxu0 0.0
        %1709 = vmatpush.msra.mxu0 0.0
        %1710 = vmatpush.msra.mxu0 %v1590
        %1711 = vmatpush.msra.mxu0 %v1589
        %1712 = vmatpush.msra.mxu0 %v1588
        %1713 = vmatpush.msra.mxu0 %v1587
        %1714 = vmatmul.f32.gmra.mxu0 %v1596
        %v1715 = vpop.f32.mrf.mxu0
        %v1716 = vadd.f32 %v1696, %v1715
        %1717 = vdwg.mxu0
        %v1718 = vmax.f32 %v1656, 0.0
        %v1719 = vmax.f32 %v1716, 0.0
        %v1720 = vmul.f32 %v1718, %v396
        %v1721 = vmul.f32 %v1719, %v397
        %1722 = vrot.lane.b32.xlu0 %v1720, 17
        %v1723 = vpop.permute.xlu0 %1722
        %1724 = vrot.lane.b32.xlu0 %v1721, 17
        %v1725 = vpop.permute.xlu0 %1724
        %v1726 = vsel %vm408, %v1723, %v1725
        %v1727 = vsel %vm408, %v1725, %v1723
        %v1728 = vmul.f32 %v1718, %v412
        %v1729 = vmul.f32 %v1719, %v413
        %1730 = vrot.lane.b32.xlu0 %v1728, 16
        %v1731 = vpop.permute.xlu0 %1730
        %1732 = vrot.lane.b32.xlu0 %v1729, 16
        %v1733 = vpop.permute.xlu0 %1732
        %v1734 = vsel %vm422, %v1731, %v1733
        %v1735 = vsel %vm422, %v1733, %v1731
        %v1736 = vmul.f32 %v1718, %v426
        %v1737 = vmul.f32 %v1719, %v427
        %1738 = vrot.lane.b32.xlu0 %v1736, 15
        %v1739 = vpop.permute.xlu0 %1738
        %1740 = vrot.lane.b32.xlu0 %v1737, 15
        %v1741 = vpop.permute.xlu0 %1740
        %v1742 = vsel %vm436, %v1739, %v1741
        %v1743 = vsel %vm436, %v1741, %v1739
        %v1744 = vmul.f32 %v1718, %v440
        %v1745 = vmul.f32 %v1719, %v441
        %1746 = vrot.lane.b32.xlu0 %v1744, 1
        %v1747 = vpop.permute.xlu0 %1746
        %1748 = vrot.lane.b32.xlu0 %v1745, 1
        %v1749 = vpop.permute.xlu0 %1748
        %v1750 = vsel %vm450, %v1747, %v1749
        %v1751 = vsel %vm450, %v1749, %v1747
        %v1752 = vmul.f32 %v1718, %v454
        %v1753 = vmul.f32 %v1719, %v455
        %1754 = vrot.lane.b32.xlu0 %v1752, 127
        %v1755 = vpop.permute.xlu0 %1754
        %1756 = vrot.lane.b32.xlu0 %v1753, 127
        %v1757 = vpop.permute.xlu0 %1756
        %v1758 = vsel %vm464, %v1755, %v1757
        %v1759 = vsel %vm464, %v1757, %v1755
        %v1760 = vmul.f32 %v1718, %v468
        %v1761 = vmul.f32 %v1719, %v469
        %1762 = vrot.lane.b32.xlu0 %v1760, 113
        %v1763 = vpop.permute.xlu0 %1762
        %1764 = vrot.lane.b32.xlu0 %v1761, 113
        %v1765 = vpop.permute.xlu0 %1764
        %v1766 = vsel %vm478, %v1763, %v1765
        %v1767 = vsel %vm478, %v1765, %v1763
        %v1768 = vmul.f32 %v1718, %v482
        %v1769 = vmul.f32 %v1719, %v483
        %1770 = vrot.lane.b32.xlu0 %v1768, 112
        %v1771 = vpop.permute.xlu0 %1770
        %1772 = vrot.lane.b32.xlu0 %v1769, 112
        %v1773 = vpop.permute.xlu0 %1772
        %v1774 = vsel %vm492, %v1771, %v1773
        %v1775 = vsel %vm492, %v1773, %v1771
        %v1776 = vmul.f32 %v1718, %v496
        %v1777 = vmul.f32 %v1719, %v497
        %1778 = vrot.lane.b32.xlu0 %v1776, 111
        %v1779 = vpop.permute.xlu0 %1778
        %1780 = vrot.lane.b32.xlu0 %v1777, 111
        %v1781 = vpop.permute.xlu0 %1780
        %v1782 = vsel %vm506, %v1779, %v1781
        %v1783 = vsel %vm506, %v1781, %v1779
        %v1784 = vld [vmem:[#allocation12] sm:$0xff]
        %v1786 = vsel %vm510, %v1784, 0
        %1788 = vmatpush.msra.mxu0 0.0
        %1789 = vmatpush.msra.mxu0 0.0
        %1790 = vmatpush.msra.mxu0 0.0
        %1791 = vmatpush.msra.mxu0 0.0
        %1792 = vmatpush.msra.mxu0 0.0
        %1793 = vmatpush.msra.mxu0 0.0
        %1794 = vmatpush.msra.mxu0 0.0
        %1795 = vmatpush.msra.mxu0 %v1782
        %1796 = vmatpush.msra.mxu0 %v1774
        %1797 = vmatpush.msra.mxu0 %v1766
        %1798 = vmatpush.msra.mxu0 %v1758
        %1799 = vmatpush.msra.mxu0 %v1718
        %1800 = vmatpush.msra.mxu0 %v1751
        %1801 = vmatpush.msra.mxu0 %v1743
        %1802 = vmatpush.msra.mxu0 %v1735
        %1803 = vmatpush.msra.mxu0 %v1727
        %1804 = vmatmul.f32.gmra.mxu0 %v1786
        %v1805 = vpop.f32.mrf.mxu0
        %v1806 = vadd.f32 0.0, %v1805
        %1807 = vdwg.mxu0
        %1808 = vmatpush.msra.mxu0 0.0
        %1809 = vmatpush.msra.mxu0 0.0
        %1810 = vmatpush.msra.mxu0 0.0
        %1811 = vmatpush.msra.mxu0 0.0
        %1812 = vmatpush.msra.mxu0 0.0
        %1813 = vmatpush.msra.mxu0 0.0
        %1814 = vmatpush.msra.mxu0 0.0
        %1815 = vmatpush.msra.mxu0 %v1783
        %1816 = vmatpush.msra.mxu0 %v1775
        %1817 = vmatpush.msra.mxu0 %v1767
        %1818 = vmatpush.msra.mxu0 %v1759
        %1819 = vmatpush.msra.mxu0 %v1719
        %1820 = vmatpush.msra.mxu0 %v1750
        %1821 = vmatpush.msra.mxu0 %v1742
        %1822 = vmatpush.msra.mxu0 %v1734
        %1823 = vmatpush.msra.mxu0 %v1726
        %1824 = vmatmul.f32.gmra.mxu0 %v1786
        %v1825 = vpop.f32.mrf.mxu0
        %v1826 = vadd.f32 0.0, %v1825
        %1827 = vdwg.mxu0
        %v1828 = vmax.f32 %v1806, 0.0
        %v1829 = vmax.f32 %v1826, 0.0
        %v1830 = vadd.f32 %v377, %v1828
        %v1831 = vadd.f32 %v378, %v1829
        %1832 = vst [vmem:[%s374] sm:$0xff] %v1830
        %1833 = vst [vmem:[%s374 + $0x8] sm:$0xff] %v1831
        %s1834 = sand.u32 %s188, 1
        %s1835 = scalar_lea.sflag [#allocation5], %s1834
        %s1836 = sand.u32 %s188, 1
        %s1837 = smul.addr %s1836, 16
        %s1838 = scalar_lea.vmem [#allocation14], %s1837
        // Predicated region
        $region73: #{tpu_custom_call.1} parent=47 // pred_check
          %p1839 = pneg %p198
        $region74: #{tpu_custom_call.1} parent=47 // pred_check_branch
          %1841 = sbr.rel (%p1839) target = $region76
        $region75: #{tpu_custom_call.1} parent=47 // pred_region
          %s1842 = smul.u32 2, %s28
          %1844 = vsyncadd %s1835, 0
          %s1845 = smul.addr %s1842, 8
          %s1846 = scalar_lea.hbm %s7, %s1845
          %s1848 = sshll.u32 %s1838, 4
          %s1849 = int_to_ptr.vmem [resolvable:$true] %s1848
          %s1850 = sshll.u32 %s1846, 4
          %s1851 = int_to_ptr.hbm [resolvable:$true] %s1850
          %1853 = dma.vmem_to_hbm [thread:$0]  %s1849, 256, %s1851, %s1835
        $region76: #{tpu_custom_call.1} parent=47 // pred_fallthru
          _
      $region48: #{tpu_custom_call.1} parent=5 // pred_fallthru
        _
      %p1854 = scmp.le.s32.totalorder 2, %s23
      // Predicated region
      $region77: #{tpu_custom_call.1} parent=5 // pred_check
        %p1855 = pneg %p1854
      $region78: #{tpu_custom_call.1} parent=5 // pred_check_branch
        %1857 = sbr.rel (%p1855) target = $region80
      $region79: #{tpu_custom_call.1} parent=5 // pred_region
        %s1858 = ssub.s32 %s23, 2
        // Predicated region
        $region81: #{tpu_custom_call.1} parent=79 // pred_check
          %p1859 = pneg %p204
        $region82: #{tpu_custom_call.1} parent=79 // pred_check_branch
          %1861 = sbr.rel (%p1859) target = $region84
        $region83: #{tpu_custom_call.1} parent=79 // pred_region
          %s1862 = sand.u32 %s189, 1
          %s1863 = scalar_lea.sflag [#allocation5], %s1862
          %s1864 = sand.u32 %s189, 1
          %s1865 = smul.addr %s1864, 16
          %s1866 = scalar_lea.vmem [#allocation14], %s1865
          %1868 = dma.done %s1863, 256
        $region84: #{tpu_custom_call.1} parent=79 // pred_fallthru
          _
      $region80: #{tpu_custom_call.1} parent=5 // pred_fallthru
        _
    $region6: #{tpu_custom_call.1} parent=1 // loop_footer
      %s27 = sadd.s32 1, %s23
    $region7: #{tpu_custom_call.1} parent=1 // loop_footer_branch
      %22 = sbr.rel target = $region3
    $region8: #{tpu_custom_call.1} parent=1 // loop_exit
      _
    %1869 = vsyncpa [#allocation4], 1
    %s1870 = scalar_lea.sflag [#allocation4], 1
    %1871 = vsyncpa %s1870, 1
    %1872 = vsyncpa [#allocation7], 1
    %1873 = vsyncpa [#allocation10], 1
    %1874 = vsyncpa [#allocation13], 1
    %1875 = vsyncpa [#allocation5], 1
    %s1876 = scalar_lea.sflag [#allocation5], 1
    %1877 = vsyncpa %s1876, 1

</llo_original>
